<compile_context>
chip_gen: v7x
topology: tpu7x:2x2x1
jax: 0.10.0
libtpu: 0.0.40
codegen_flags: <defaults>
</compile_context>

<pallas_src>
import functools
import math

import jax
import jax.numpy as jnp
from jax import lax
from jax.experimental import pallas as pl
from jax.experimental.pallas import tpu as pltpu

F32 = jnp.float32
BF16 = jnp.bfloat16


# ---------------------------------------------------------------------------
# Kernel 1: head-major Q/K/V projection -- every row tile projected exactly once
# ---------------------------------------------------------------------------
def qkv_project_kernel(x_ref, wq_ref, bq_ref, wk_ref, bk_ref, wv_ref, bv_ref,
                       q_ref, k_ref, v_ref, *, n_heads, scale):
    x_b = x_ref[0].astype(BF16)                       # (TS, D)
    for h in range(n_heads):                          # static unroll over heads
        q = jnp.dot(x_b, wq_ref[h], preferred_element_type=F32) + bq_ref[h]
        k = jnp.dot(x_b, wk_ref[h], preferred_element_type=F32) + bk_ref[h]
        v = jnp.dot(x_b, wv_ref[h], preferred_element_type=F32) + bv_ref[h]
        q_ref[0, h] = (q * scale).astype(BF16)        # 1/sqrt(hd) applied here
        k_ref[0, h] = k.astype(BF16)
        v_ref[0, h] = v.astype(BF16)


# ---------------------------------------------------------------------------
# Kernel 2: flash attention over KV tiles + out-proj + LN1 + FFN + LN2
# ---------------------------------------------------------------------------
def attn_ffn_kernel(x_ref, q_ref, k_ref, v_ref,
                    wo_ref, bo_ref, ln1w_ref, ln1b_ref,
                    w1_ref, b1_ref, w2_ref, b2_ref, ln2w_ref, ln2b_ref,
                    out_ref, m_sc, l_sc, acc_sc, *, n_heads, eps):
    ki = pl.program_id(2)

    @pl.when(ki == 0)
    def _init():
        m_sc[...] = jnp.full_like(m_sc, -jnp.inf)
        l_sc[...] = jnp.zeros_like(l_sc)
        acc_sc[...] = jnp.zeros_like(acc_sc)

    qh = q_ref[0]                                     # (H, TQ,  hd) bf16 (pre-scaled)
    kh = k_ref[0]                                     # (H, TKV, hd) bf16
    vh = v_ref[0]                                     # (H, TKV, hd) bf16

    # Online softmax over the KV axis, all heads batched on the leading dim.
    s = jnp.einsum("hqd,hkd->hqk", qh, kh, preferred_element_type=F32)
    m_prev = m_sc[...]
    m_new = jnp.maximum(m_prev, s.max(axis=-1, keepdims=True))
    alpha = jnp.exp(m_prev - m_new)
    p = jnp.exp(s - m_new)
    l_sc[...] = alpha * l_sc[...] + p.sum(axis=-1, keepdims=True)
    acc_sc[...] = alpha * acc_sc[...] + jnp.einsum(
        "hqk,hkd->hqd", p.astype(BF16), vh, preferred_element_type=F32)
    m_sc[...] = m_new

    @pl.when(ki == pl.num_programs(2) - 1)
    def _finalize():
        x = x_ref[0]                                  # (TQ, D) f32 residual rows
        tq, dim = x.shape

        ctx = acc_sc[...] * pl.reciprocal(l_sc[...], approx=True)   # (H, TQ, hd)

        # Out-projection with the head reduction fused into the accumulation:
        # concat_h(ctx_h) @ W_out  ==  sum_h ctx_h @ W_out[h]
        attn = jnp.zeros((tq, dim), F32)
        for h in range(n_heads):
            attn = attn + jnp.dot(ctx[h].astype(BF16), wo_ref[h],
                                  preferred_element_type=F32)
        attn = attn + bo_ref[...]

        # x = x + LayerNorm(attn)
        mu1 = jnp.mean(attn, axis=-1, keepdims=True)
        var1 = jnp.mean(jnp.square(attn - mu1), axis=-1, keepdims=True)
        n1 = (attn - mu1) * lax.rsqrt(var1 + eps) * ln1w_ref[...] + ln1b_ref[...]
        x1 = x + n1

        # FFN: Linear -> GELU -> Linear (bf16 operands, f32 accumulation)
        # TODO(synk): K-tile the hidden dim for dim >= 2k on v7x (64 MiB VMEM).
        hmid = jnp.dot(x1.astype(BF16), w1_ref[...],
                       preferred_element_type=F32) + b1_ref[...]
        hmid = jax.nn.gelu(hmid)
        f = jnp.dot(hmid.astype(BF16), w2_ref[...],
                    preferred_element_type=F32) + b2_ref[...]

        # x = x + LayerNorm(ffn)
        mu2 = jnp.mean(f, axis=-1, keepdims=True)
        var2 = jnp.mean(jnp.square(f - mu2), axis=-1, keepdims=True)
        n2 = (f - mu2) * lax.rsqrt(var2 + eps) * ln2w_ref[...] + ln2b_ref[...]

        out_ref[0] = (x1 + n2).astype(out_ref.dtype)


# ---------------------------------------------------------------------------
# Wrappers
# ---------------------------------------------------------------------------
def _vmem_limit_bytes():
    """~85% of this generation's VMEM, capped at 100 MiB.
    v5e/v6e (128 MiB phys) -> 100 MiB; v7x (64 MiB phys) -> ~54 MiB."""
    try:
        cap = pltpu.get_tpu_info().vmem_capacity_bytes
    except Exception:
        cap = 128 * 1024 * 1024
    return int(min(100 * 1024 * 1024, cap * 0.85))


def _rep(arr):
    """Replicated parameter block: same block every step, single-buffered."""
    zeros = (0,) * arr.ndim
    idx = lambda *_: zeros
    try:
        return pl.BlockSpec(arr.shape, idx, pipeline_mode=pl.Buffered(1))
    except (TypeError, ValueError):
        return pl.BlockSpec(arr.shape, idx)


def qkv_project(x, params, *, n_heads, ts=256):
    B, S, D = x.shape
    hd = D // n_heads
    TS = min(S, ts)
    assert S % TS == 0, "seq_len must be divisible by the projection row tile"
    scale = 1.0 / math.sqrt(hd)

    weights = [params[n] for n in
               ("wq_h", "bq_h", "wk_h", "bk_h", "wv_h", "bv_h")]
    out_sds = jax.ShapeDtypeStruct((B, n_heads, S, hd), BF16)
    kernel = functools.partial(qkv_project_kernel, n_heads=n_heads, scale=scale)

    return pl.pallas_call(
        kernel,
        out_shape=(out_sds, out_sds, out_sds),
        grid=(B, S // TS),
        in_specs=[pl.BlockSpec((1, TS, D), lambda b, si: (b, si, 0))]
                 + [_rep(w) for w in weights],
        out_specs=tuple(
            pl.BlockSpec((1, n_heads, TS, hd), lambda b, si: (b, 0, si, 0))
            for _ in range(3)),
        compiler_params=pltpu.CompilerParams(
            dimension_semantics=("parallel", "parallel"),
            vmem_limit_bytes=_vmem_limit_bytes()),
    )(x, *weights)


def encoder_block(x, params, *, n_heads, eps, tq=256, tkv=512, ts=256):
    """x: (batch, seq, dim) float32 -> (batch, seq, dim) float32."""
    B, S, D = x.shape
    assert D % n_heads == 0
    hd = D // n_heads
    TQ, TKV = min(S, tq), min(S, tkv)
    assert S % TQ == 0 and S % TKV == 0, "seq_len must be divisible by the tiles"
    nq, nkv = S // TQ, S // TKV

    # Phase 1: head-major Q/K/V, each row projected exactly once (bf16 in HBM).
    q_h, k_h, v_h = qkv_project(x, params, n_heads=n_heads, ts=ts)

    weights = [params[n] for n in
               ("wo_h", "bo", "ln1_w", "ln1_b",
                "w1", "b1", "w2", "b2", "ln2_w", "ln2_b")]
    kernel = functools.partial(attn_ffn_kernel, n_heads=n_heads, eps=eps)

    in_specs = (
        [pl.BlockSpec((1, TQ, D), lambda b, qi, ki: (b, qi, 0)),           # residual
         pl.BlockSpec((1, n_heads, TQ, hd), lambda b, qi, ki: (b, 0, qi, 0)),
         pl.BlockSpec((1, n_heads, TKV, hd), lambda b, qi, ki: (b, 0, ki, 0)),
         pl.BlockSpec((1, n_heads, TKV, hd), lambda b, qi, ki: (b, 0, ki, 0))]
        + [_rep(w) for w in weights])

    # b and qi are independent -> "parallel" (shards across v7x's 2 TensorCores);
    # the KV reduction axis is innermost and "arbitrary".
    return pl.pallas_call(
        kernel,
        out_shape=jax.ShapeDtypeStruct((B, S, D), x.dtype),
        grid=(B, nq, nkv),
        in_specs=in_specs,
        out_specs=pl.BlockSpec((1, TQ, D), lambda b, qi, ki: (b, qi, 0)),
        scratch_shapes=[pltpu.VMEM((n_heads, TQ, 1), F32),    # running max
                        pltpu.VMEM((n_heads, TQ, 1), F32),    # running sum
                        pltpu.VMEM((n_heads, TQ, hd), F32)],  # ctx accumulator
        compiler_params=pltpu.CompilerParams(
            dimension_semantics=("parallel", "parallel", "arbitrary"),
            vmem_limit_bytes=_vmem_limit_bytes()),
    )(x, q_h, k_h, v_h, *weights)


# ---------------------------------------------------------------------------
# Pure-JAX reference with matching numerics (bf16 matmul operands, f32 acc)
# ---------------------------------------------------------------------------
def encoder_block_ref(x, params, *, n_heads, eps):
    B, S, D = x.shape
    hd = D // n_heads
    scale = 1.0 / math.sqrt(hd)

    def pdot(a, w):
        return jnp.dot(a.astype(BF16), w.astype(BF16), preferred_element_type=F32)

    def w_full(w_h):                 # (H, D, hd) -> (D, D), heads on columns
        return jnp.transpose(w_h, (1, 0, 2)).reshape(D, D)

    def b_full(b_h):                 # (H, 1, hd) -> (1, D)
        return jnp.transpose(b_h, (1, 0, 2)).reshape(1, D)

    q = (pdot(x, w_full(params["wq_h"])) + b_full(params["bq_h"])) * scale
    k = pdot(x, w_full(params["wk_h"])) + b_full(params["bk_h"])
    v = pdot(x, w_full(params["wv_h"])) + b_full(params["bv_h"])

    def split(t):                    # (B, S, D) -> (B, H, S, hd)
        return t.reshape(B, S, n_heads, hd).transpose(0, 2, 1, 3)

    qh, kh, vh = split(q), split(k), split(v)
    s = jnp.einsum("bhqd,bhkd->bhqk", qh.astype(BF16), kh.astype(BF16),
                   preferred_element_type=F32)
    p = jax.nn.softmax(s, axis=-1)
    ctx = jnp.einsum("bhqk,bhkd->bhqd", p.astype(BF16), vh.astype(BF16),
                     preferred_element_type=F32)
    ctx = ctx.transpose(0, 2, 1, 3).reshape(B, S, D)
    attn = pdot(ctx, params["wo_h"].reshape(D, D)) + params["bo"]

    def ln(t, g, b):
        mu = t.mean(-1, keepdims=True)
        var = jnp.square(t - mu).mean(-1, keepdims=True)
        return (t - mu) * lax.rsqrt(var + eps) * g + b

    x1 = x + ln(attn, params["ln1_w"], params["ln1_b"])
    h = jax.nn.gelu(pdot(x1, params["w1"]) + params["b1"])
    f = pdot(h, params["w2"]) + params["b2"]
    return x1 + ln(f, params["ln2_w"], params["ln2_b"])


def init_params(key, dim, n_heads, ffn_hidden):
    hd = dim // n_heads
    std = 0.02
    ks = jax.random.split(key, 12)

    def head_major(w):               # (dim, dim) -> (H, dim, hd)
        return jnp.transpose(w.reshape(dim, n_heads, hd), (1, 0, 2))

    w_q = jax.random.normal(ks[0], (dim, dim), F32) * std
    w_k = jax.random.normal(ks[1], (dim, dim), F32) * std
    w_v = jax.random.normal(ks[2], (dim, dim), F32) * std
    w_o = jax.random.normal(ks[3], (dim, dim), F32) * std
    w_1 = jax.random.normal(ks[4], (dim, ffn_hidden), F32) * std
    b_1 = jax.random.normal(ks[5], (1, ffn_hidden), F32) * std
    w_2 = jax.random.normal(ks[6], (ffn_hidden, dim), F32) * std
    b_2 = jax.random.normal(ks[7], (1, dim), F32) * std
    b_q = jax.random.normal(ks[8], (n_heads, 1, hd), F32) * std
    b_k = jax.random.normal(ks[9], (n_heads, 1, hd), F32) * std
    b_v = jax.random.normal(ks[10], (n_heads, 1, hd), F32) * std
    b_o = jax.random.normal(ks[11], (1, dim), F32) * std
    return {
        "wq_h": head_major(w_q).astype(BF16), "bq_h": b_q,
        "wk_h": head_major(w_k).astype(BF16), "bk_h": b_k,
        "wv_h": head_major(w_v).astype(BF16), "bv_h": b_v,
        "wo_h": w_o.reshape(n_heads, hd, dim).astype(BF16), "bo": b_o,
        "ln1_w": jnp.ones((1, dim), F32), "ln1_b": jnp.zeros((1, dim), F32),
        "w1": w_1.astype(BF16), "b1": b_1,
        "w2": w_2.astype(BF16), "b2": b_2,
        "ln2_w": jnp.ones((1, dim), F32), "ln2_b": jnp.zeros((1, dim), F32),
    }


if __name__ == "__main__":
    # Small ModelConfig-consistent shapes: dim=32, n_heads=4, seq=8, batch=2.
    BATCH, SEQ, DIM, N_HEADS = 2, 8, 32, 4
    FFN_HIDDEN = 4 * DIM
    NORM_EPS = 1e-5

    key = jax.random.PRNGKey(0)
    kx, kp = jax.random.split(key)
    x = jax.random.normal(kx, (BATCH, SEQ, DIM), F32)   # (batch, seq, dim)
    params = init_params(kp, DIM, N_HEADS, FFN_HIDDEN)

    out = encoder_block(x, params, n_heads=N_HEADS, eps=NORM_EPS)
    out = jax.block_until_ready(out)

    ref = encoder_block_ref(x, params, n_heads=N_HEADS, eps=NORM_EPS)
    assert out.shape == (BATCH, SEQ, DIM)
    assert bool(jnp.allclose(out, ref, atol=2e-2, rtol=2e-2)), \
        "mismatch vs JAX reference"

    print("KERNEL_OK")
</pallas_src>

<mosaic_0001>
module attributes {stable_mosaic.version = 11 : i64} {
  func.func @qkv_project_kernel(%arg0: i32, %arg1: i32, %arg2: memref<1x8x32xf32, #tpu.memory_space<vmem>>, %arg3: memref<4x32x8xbf16, #tpu.memory_space<vmem>>, %arg4: memref<4x1x8xf32, #tpu.memory_space<vmem>>, %arg5: memref<4x32x8xbf16, #tpu.memory_space<vmem>>, %arg6: memref<4x1x8xf32, #tpu.memory_space<vmem>>, %arg7: memref<4x32x8xbf16, #tpu.memory_space<vmem>>, %arg8: memref<4x1x8xf32, #tpu.memory_space<vmem>>, %arg9: memref<1x4x8x8xbf16, #tpu.memory_space<vmem>>, %arg10: memref<1x4x8x8xbf16, #tpu.memory_space<vmem>>, %arg11: memref<1x4x8x8xbf16, #tpu.memory_space<vmem>>) attributes {dimension_semantics = [#tpu.dimension_semantics<parallel>, #tpu.dimension_semantics<parallel>], iteration_bounds = array<i64: 2, 1>, scalar_prefetch = 0 : i64, scratch_operands = 0 : i64, tpu.core_type = #tpu.core_type<tc>, window_params = [{transform_indices = @transform_0, window_bounds = array<i64: 1, 8, 32>}, {pipeline_mode = #tpu.pipeline_mode<synchronous>, transform_indices = @transform_1, window_bounds = array<i64: 4, 32, 8>}, {pipeline_mode = #tpu.pipeline_mode<synchronous>, transform_indices = @transform_2, window_bounds = array<i64: 4, 1, 8>}, {pipeline_mode = #tpu.pipeline_mode<synchronous>, transform_indices = @transform_3, window_bounds = array<i64: 4, 32, 8>}, {pipeline_mode = #tpu.pipeline_mode<synchronous>, transform_indices = @transform_4, window_bounds = array<i64: 4, 1, 8>}, {pipeline_mode = #tpu.pipeline_mode<synchronous>, transform_indices = @transform_5, window_bounds = array<i64: 4, 32, 8>}, {pipeline_mode = #tpu.pipeline_mode<synchronous>, transform_indices = @transform_6, window_bounds = array<i64: 4, 1, 8>}, {transform_indices = @transform_7, window_bounds = array<i64: 1, 4, 8, 8>}, {transform_indices = @transform_8, window_bounds = array<i64: 1, 4, 8, 8>}, {transform_indices = @transform_9, window_bounds = array<i64: 1, 4, 8, 8>}]} {
    %c0 = arith.constant 0 : index
    %c0_0 = arith.constant 0 : index
    %c0_1 = arith.constant 0 : index
    %0 = vector.load %arg2[%c0, %c0_0, %c0_1] : memref<1x8x32xf32, #tpu.memory_space<vmem>>, vector<1x8x32xf32>
    %1 = vector.shape_cast %0 : vector<1x8x32xf32> to vector<8x32xf32>
    %2 = arith.truncf %1 : vector<8x32xf32> to vector<8x32xbf16>
    %c0_2 = arith.constant 0 : index
    %c0_3 = arith.constant 0 : index
    %c0_4 = arith.constant 0 : index
    %3 = vector.load %arg3[%c0_2, %c0_3, %c0_4] : memref<4x32x8xbf16, #tpu.memory_space<vmem>>, vector<1x32x8xbf16>
    %4 = vector.shape_cast %3 : vector<1x32x8xbf16> to vector<32x8xbf16>
    %cst = arith.constant dense<0.000000e+00> : vector<8x8xf32>
    %5 = tpu.matmul %2, %4, %cst {dimension_numbers = #tpu.dot_dimension_numbers<[1], [0], [0], [1], [0, 0, 1, 1], [], []>} : vector<8x32xbf16>, vector<32x8xbf16>, vector<8x8xf32> -> vector<8x8xf32>
    %c0_5 = arith.constant 0 : index
    %c0_6 = arith.constant 0 : index
    %c0_7 = arith.constant 0 : index
    %6 = vector.load %arg4[%c0_5, %c0_6, %c0_7] : memref<4x1x8xf32, #tpu.memory_space<vmem>>, vector<1x1x8xf32>
    %7 = vector.shape_cast %6 : vector<1x1x8xf32> to vector<1x8xf32>
    %8 = vector.broadcast %7 : vector<1x8xf32> to vector<8x8xf32>
    %9 = arith.addf %5, %8 : vector<8x8xf32>
    %c0_8 = arith.constant 0 : index
    %c0_9 = arith.constant 0 : index
    %c0_10 = arith.constant 0 : index
    %10 = vector.load %arg5[%c0_8, %c0_9, %c0_10] : memref<4x32x8xbf16, #tpu.memory_space<vmem>>, vector<1x32x8xbf16>
    %11 = vector.shape_cast %10 : vector<1x32x8xbf16> to vector<32x8xbf16>
    %cst_11 = arith.constant dense<0.000000e+00> : vector<8x8xf32>
    %12 = tpu.matmul %2, %11, %cst_11 {dimension_numbers = #tpu.dot_dimension_numbers<[1], [0], [0], [1], [0, 0, 1, 1], [], []>} : vector<8x32xbf16>, vector<32x8xbf16>, vector<8x8xf32> -> vector<8x8xf32>
    %c0_12 = arith.constant 0 : index
    %c0_13 = arith.constant 0 : index
    %c0_14 = arith.constant 0 : index
    %13 = vector.load %arg6[%c0_12, %c0_13, %c0_14] : memref<4x1x8xf32, #tpu.memory_space<vmem>>, vector<1x1x8xf32>
    %14 = vector.shape_cast %13 : vector<1x1x8xf32> to vector<1x8xf32>
    %15 = vector.broadcast %14 : vector<1x8xf32> to vector<8x8xf32>
    %16 = arith.addf %12, %15 : vector<8x8xf32>
    %c0_15 = arith.constant 0 : index
    %c0_16 = arith.constant 0 : index
    %c0_17 = arith.constant 0 : index
    %17 = vector.load %arg7[%c0_15, %c0_16, %c0_17] : memref<4x32x8xbf16, #tpu.memory_space<vmem>>, vector<1x32x8xbf16>
    %18 = vector.shape_cast %17 : vector<1x32x8xbf16> to vector<32x8xbf16>
    %cst_18 = arith.constant dense<0.000000e+00> : vector<8x8xf32>
    %19 = tpu.matmul %2, %18, %cst_18 {dimension_numbers = #tpu.dot_dimension_numbers<[1], [0], [0], [1], [0, 0, 1, 1], [], []>} : vector<8x32xbf16>, vector<32x8xbf16>, vector<8x8xf32> -> vector<8x8xf32>
    %c0_19 = arith.constant 0 : index
    %c0_20 = arith.constant 0 : index
    %c0_21 = arith.constant 0 : index
    %20 = vector.load %arg8[%c0_19, %c0_20, %c0_21] : memref<4x1x8xf32, #tpu.memory_space<vmem>>, vector<1x1x8xf32>
    %21 = vector.shape_cast %20 : vector<1x1x8xf32> to vector<1x8xf32>
    %22 = vector.broadcast %21 : vector<1x8xf32> to vector<8x8xf32>
    %23 = arith.addf %19, %22 : vector<8x8xf32>
    %cst_22 = arith.constant 0.353553385 : f32
    %24 = vector.broadcast %cst_22 : f32 to vector<8x8xf32>
    %25 = arith.mulf %9, %24 : vector<8x8xf32>
    %26 = arith.truncf %25 : vector<8x8xf32> to vector<8x8xbf16>
    %c0_23 = arith.constant 0 : index
    %c0_24 = arith.constant 0 : index
    %c0_25 = arith.constant 0 : index
    %c0_26 = arith.constant 0 : index
    %27 = vector.load %arg9[%c0_23, %c0_24, %c0_25, %c0_26] : memref<1x4x8x8xbf16, #tpu.memory_space<vmem>>, vector<1x1x8x8xbf16>
    %28 = vector.shape_cast %27 : vector<1x1x8x8xbf16> to vector<8x8xbf16>
    %29 = vector.shape_cast %26 : vector<8x8xbf16> to vector<1x1x8x8xbf16>
    tpu.vector_store %arg9[%c0_23, %c0_24, %c0_25, %c0_26], %29 {strides = array<i32>} : memref<1x4x8x8xbf16, #tpu.memory_space<vmem>>, vector<1x1x8x8xbf16>,
    %30 = arith.truncf %16 : vector<8x8xf32> to vector<8x8xbf16>
    %c0_27 = arith.constant 0 : index
    %c0_28 = arith.constant 0 : index
    %c0_29 = arith.constant 0 : index
    %c0_30 = arith.constant 0 : index
    %31 = vector.load %arg10[%c0_27, %c0_28, %c0_29, %c0_30] : memref<1x4x8x8xbf16, #tpu.memory_space<vmem>>, vector<1x1x8x8xbf16>
    %32 = vector.shape_cast %31 : vector<1x1x8x8xbf16> to vector<8x8xbf16>
    %33 = vector.shape_cast %30 : vector<8x8xbf16> to vector<1x1x8x8xbf16>
    tpu.vector_store %arg10[%c0_27, %c0_28, %c0_29, %c0_30], %33 {strides = array<i32>} : memref<1x4x8x8xbf16, #tpu.memory_space<vmem>>, vector<1x1x8x8xbf16>,
    %34 = arith.truncf %23 : vector<8x8xf32> to vector<8x8xbf16>
    %c0_31 = arith.constant 0 : index
    %c0_32 = arith.constant 0 : index
    %c0_33 = arith.constant 0 : index
    %c0_34 = arith.constant 0 : index
    %35 = vector.load %arg11[%c0_31, %c0_32, %c0_33, %c0_34] : memref<1x4x8x8xbf16, #tpu.memory_space<vmem>>, vector<1x1x8x8xbf16>
    %36 = vector.shape_cast %35 : vector<1x1x8x8xbf16> to vector<8x8xbf16>
    %37 = vector.shape_cast %34 : vector<8x8xbf16> to vector<1x1x8x8xbf16>
    tpu.vector_store %arg11[%c0_31, %c0_32, %c0_33, %c0_34], %37 {strides = array<i32>} : memref<1x4x8x8xbf16, #tpu.memory_space<vmem>>, vector<1x1x8x8xbf16>,
    %c1 = arith.constant 1 : index
    %c0_35 = arith.constant 0 : index
    %c0_36 = arith.constant 0 : index
    %38 = vector.load %arg3[%c1, %c0_35, %c0_36] : memref<4x32x8xbf16, #tpu.memory_space<vmem>>, vector<1x32x8xbf16>
    %39 = vector.shape_cast %38 : vector<1x32x8xbf16> to vector<32x8xbf16>
    %cst_37 = arith.constant dense<0.000000e+00> : vector<8x8xf32>
    %40 = tpu.matmul %2, %39, %cst_37 {dimension_numbers = #tpu.dot_dimension_numbers<[1], [0], [0], [1], [0, 0, 1, 1], [], []>} : vector<8x32xbf16>, vector<32x8xbf16>, vector<8x8xf32> -> vector<8x8xf32>
    %c1_38 = arith.constant 1 : index
    %c0_39 = arith.constant 0 : index
    %c0_40 = arith.constant 0 : index
    %41 = vector.load %arg4[%c1_38, %c0_39, %c0_40] : memref<4x1x8xf32, #tpu.memory_space<vmem>>, vector<1x1x8xf32>
    %42 = vector.shape_cast %41 : vector<1x1x8xf32> to vector<1x8xf32>
    %43 = vector.broadcast %42 : vector<1x8xf32> to vector<8x8xf32>
    %44 = arith.addf %40, %43 : vector<8x8xf32>
    %c1_41 = arith.constant 1 : index
    %c0_42 = arith.constant 0 : index
    %c0_43 = arith.constant 0 : index
    %45 = vector.load %arg5[%c1_41, %c0_42, %c0_43] : memref<4x32x8xbf16, #tpu.memory_space<vmem>>, vector<1x32x8xbf16>
    %46 = vector.shape_cast %45 : vector<1x32x8xbf16> to vector<32x8xbf16>
    %cst_44 = arith.constant dense<0.000000e+00> : vector<8x8xf32>
    %47 = tpu.matmul %2, %46, %cst_44 {dimension_numbers = #tpu.dot_dimension_numbers<[1], [0], [0], [1], [0, 0, 1, 1], [], []>} : vector<8x32xbf16>, vector<32x8xbf16>, vector<8x8xf32> -> vector<8x8xf32>
    %c1_45 = arith.constant 1 : index
    %c0_46 = arith.constant 0 : index
    %c0_47 = arith.constant 0 : index
    %48 = vector.load %arg6[%c1_45, %c0_46, %c0_47] : memref<4x1x8xf32, #tpu.memory_space<vmem>>, vector<1x1x8xf32>
    %49 = vector.shape_cast %48 : vector<1x1x8xf32> to vector<1x8xf32>
    %50 = vector.broadcast %49 : vector<1x8xf32> to vector<8x8xf32>
    %51 = arith.addf %47, %50 : vector<8x8xf32>
    %c1_48 = arith.constant 1 : index
    %c0_49 = arith.constant 0 : index
    %c0_50 = arith.constant 0 : index
    %52 = vector.load %arg7[%c1_48, %c0_49, %c0_50] : memref<4x32x8xbf16, #tpu.memory_space<vmem>>, vector<1x32x8xbf16>
    %53 = vector.shape_cast %52 : vector<1x32x8xbf16> to vector<32x8xbf16>
    %cst_51 = arith.constant dense<0.000000e+00> : vector<8x8xf32>
    %54 = tpu.matmul %2, %53, %cst_51 {dimension_numbers = #tpu.dot_dimension_numbers<[1], [0], [0], [1], [0, 0, 1, 1], [], []>} : vector<8x32xbf16>, vector<32x8xbf16>, vector<8x8xf32> -> vector<8x8xf32>
    %c1_52 = arith.constant 1 : index
    %c0_53 = arith.constant 0 : index
    %c0_54 = arith.constant 0 : index
    %55 = vector.load %arg8[%c1_52, %c0_53, %c0_54] : memref<4x1x8xf32, #tpu.memory_space<vmem>>, vector<1x1x8xf32>
    %56 = vector.shape_cast %55 : vector<1x1x8xf32> to vector<1x8xf32>
    %57 = vector.broadcast %56 : vector<1x8xf32> to vector<8x8xf32>
    %58 = arith.addf %54, %57 : vector<8x8xf32>
    %cst_55 = arith.constant 0.353553385 : f32
    %59 = vector.broadcast %cst_55 : f32 to vector<8x8xf32>
    %60 = arith.mulf %44, %59 : vector<8x8xf32>
    %61 = arith.truncf %60 : vector<8x8xf32> to vector<8x8xbf16>
    %c0_56 = arith.constant 0 : index
    %c1_57 = arith.constant 1 : index
    %c0_58 = arith.constant 0 : index
    %c0_59 = arith.constant 0 : index
    %62 = vector.load %arg9[%c0_56, %c1_57, %c0_58, %c0_59] : memref<1x4x8x8xbf16, #tpu.memory_space<vmem>>, vector<1x1x8x8xbf16>
    %63 = vector.shape_cast %62 : vector<1x1x8x8xbf16> to vector<8x8xbf16>
    %64 = vector.shape_cast %61 : vector<8x8xbf16> to vector<1x1x8x8xbf16>
    tpu.vector_store %arg9[%c0_56, %c1_57, %c0_58, %c0_59], %64 {strides = array<i32>} : memref<1x4x8x8xbf16, #tpu.memory_space<vmem>>, vector<1x1x8x8xbf16>,
    %65 = arith.truncf %51 : vector<8x8xf32> to vector<8x8xbf16>
    %c0_60 = arith.constant 0 : index
    %c1_61 = arith.constant 1 : index
    %c0_62 = arith.constant 0 : index
    %c0_63 = arith.constant 0 : index
    %66 = vector.load %arg10[%c0_60, %c1_61, %c0_62, %c0_63] : memref<1x4x8x8xbf16, #tpu.memory_space<vmem>>, vector<1x1x8x8xbf16>
    %67 = vector.shape_cast %66 : vector<1x1x8x8xbf16> to vector<8x8xbf16>
    %68 = vector.shape_cast %65 : vector<8x8xbf16> to vector<1x1x8x8xbf16>
    tpu.vector_store %arg10[%c0_60, %c1_61, %c0_62, %c0_63], %68 {strides = array<i32>} : memref<1x4x8x8xbf16, #tpu.memory_space<vmem>>, vector<1x1x8x8xbf16>,
    %69 = arith.truncf %58 : vector<8x8xf32> to vector<8x8xbf16>
    %c0_64 = arith.constant 0 : index
    %c1_65 = arith.constant 1 : index
    %c0_66 = arith.constant 0 : index
    %c0_67 = arith.constant 0 : index
    %70 = vector.load %arg11[%c0_64, %c1_65, %c0_66, %c0_67] : memref<1x4x8x8xbf16, #tpu.memory_space<vmem>>, vector<1x1x8x8xbf16>
    %71 = vector.shape_cast %70 : vector<1x1x8x8xbf16> to vector<8x8xbf16>
    %72 = vector.shape_cast %69 : vector<8x8xbf16> to vector<1x1x8x8xbf16>
    tpu.vector_store %arg11[%c0_64, %c1_65, %c0_66, %c0_67], %72 {strides = array<i32>} : memref<1x4x8x8xbf16, #tpu.memory_space<vmem>>, vector<1x1x8x8xbf16>,
    %c2 = arith.constant 2 : index
    %c0_68 = arith.constant 0 : index
    %c0_69 = arith.constant 0 : index
    %73 = vector.load %arg3[%c2, %c0_68, %c0_69] : memref<4x32x8xbf16, #tpu.memory_space<vmem>>, vector<1x32x8xbf16>
    %74 = vector.shape_cast %73 : vector<1x32x8xbf16> to vector<32x8xbf16>
    %cst_70 = arith.constant dense<0.000000e+00> : vector<8x8xf32>
    %75 = tpu.matmul %2, %74, %cst_70 {dimension_numbers = #tpu.dot_dimension_numbers<[1], [0], [0], [1], [0, 0, 1, 1], [], []>} : vector<8x32xbf16>, vector<32x8xbf16>, vector<8x8xf32> -> vector<8x8xf32>
    %c2_71 = arith.constant 2 : index
    %c0_72 = arith.constant 0 : index
    %c0_73 = arith.constant 0 : index
    %76 = vector.load %arg4[%c2_71, %c0_72, %c0_73] : memref<4x1x8xf32, #tpu.memory_space<vmem>>, vector<1x1x8xf32>
    %77 = vector.shape_cast %76 : vector<1x1x8xf32> to vector<1x8xf32>
    %78 = vector.broadcast %77 : vector<1x8xf32> to vector<8x8xf32>
    %79 = arith.addf %75, %78 : vector<8x8xf32>
    %c2_74 = arith.constant 2 : index
    %c0_75 = arith.constant 0 : index
    %c0_76 = arith.constant 0 : index
    %80 = vector.load %arg5[%c2_74, %c0_75, %c0_76] : memref<4x32x8xbf16, #tpu.memory_space<vmem>>, vector<1x32x8xbf16>
    %81 = vector.shape_cast %80 : vector<1x32x8xbf16> to vector<32x8xbf16>
    %cst_77 = arith.constant dense<0.000000e+00> : vector<8x8xf32>
    %82 = tpu.matmul %2, %81, %cst_77 {dimension_numbers = #tpu.dot_dimension_numbers<[1], [0], [0], [1], [0, 0, 1, 1], [], []>} : vector<8x32xbf16>, vector<32x8xbf16>, vector<8x8xf32> -> vector<8x8xf32>
    %c2_78 = arith.constant 2 : index
    %c0_79 = arith.constant 0 : index
    %c0_80 = arith.constant 0 : index
    %83 = vector.load %arg6[%c2_78, %c0_79, %c0_80] : memref<4x1x8xf32, #tpu.memory_space<vmem>>, vector<1x1x8xf32>
    %84 = vector.shape_cast %83 : vector<1x1x8xf32> to vector<1x8xf32>
    %85 = vector.broadcast %84 : vector<1x8xf32> to vector<8x8xf32>
    %86 = arith.addf %82, %85 : vector<8x8xf32>
    %c2_81 = arith.constant 2 : index
    %c0_82 = arith.constant 0 : index
    %c0_83 = arith.constant 0 : index
    %87 = vector.load %arg7[%c2_81, %c0_82, %c0_83] : memref<4x32x8xbf16, #tpu.memory_space<vmem>>, vector<1x32x8xbf16>
    %88 = vector.shape_cast %87 : vector<1x32x8xbf16> to vector<32x8xbf16>
    %cst_84 = arith.constant dense<0.000000e+00> : vector<8x8xf32>
    %89 = tpu.matmul %2, %88, %cst_84 {dimension_numbers = #tpu.dot_dimension_numbers<[1], [0], [0], [1], [0, 0, 1, 1], [], []>} : vector<8x32xbf16>, vector<32x8xbf16>, vector<8x8xf32> -> vector<8x8xf32>
    %c2_85 = arith.constant 2 : index
    %c0_86 = arith.constant 0 : index
    %c0_87 = arith.constant 0 : index
    %90 = vector.load %arg8[%c2_85, %c0_86, %c0_87] : memref<4x1x8xf32, #tpu.memory_space<vmem>>, vector<1x1x8xf32>
    %91 = vector.shape_cast %90 : vector<1x1x8xf32> to vector<1x8xf32>
    %92 = vector.broadcast %91 : vector<1x8xf32> to vector<8x8xf32>
    %93 = arith.addf %89, %92 : vector<8x8xf32>
    %cst_88 = arith.constant 0.353553385 : f32
    %94 = vector.broadcast %cst_88 : f32 to vector<8x8xf32>
    %95 = arith.mulf %79, %94 : vector<8x8xf32>
    %96 = arith.truncf %95 : vector<8x8xf32> to vector<8x8xbf16>
    %c0_89 = arith.constant 0 : index
    %c2_90 = arith.constant 2 : index
    %c0_91 = arith.constant 0 : index
    %c0_92 = arith.constant 0 : index
    %97 = vector.load %arg9[%c0_89, %c2_90, %c0_91, %c0_92] : memref<1x4x8x8xbf16, #tpu.memory_space<vmem>>, vector<1x1x8x8xbf16>
    %98 = vector.shape_cast %97 : vector<1x1x8x8xbf16> to vector<8x8xbf16>
    %99 = vector.shape_cast %96 : vector<8x8xbf16> to vector<1x1x8x8xbf16>
    tpu.vector_store %arg9[%c0_89, %c2_90, %c0_91, %c0_92], %99 {strides = array<i32>} : memref<1x4x8x8xbf16, #tpu.memory_space<vmem>>, vector<1x1x8x8xbf16>,
    %100 = arith.truncf %86 : vector<8x8xf32> to vector<8x8xbf16>
    %c0_93 = arith.constant 0 : index
    %c2_94 = arith.constant 2 : index
    %c0_95 = arith.constant 0 : index
    %c0_96 = arith.constant 0 : index
    %101 = vector.load %arg10[%c0_93, %c2_94, %c0_95, %c0_96] : memref<1x4x8x8xbf16, #tpu.memory_space<vmem>>, vector<1x1x8x8xbf16>
    %102 = vector.shape_cast %101 : vector<1x1x8x8xbf16> to vector<8x8xbf16>
    %103 = vector.shape_cast %100 : vector<8x8xbf16> to vector<1x1x8x8xbf16>
    tpu.vector_store %arg10[%c0_93, %c2_94, %c0_95, %c0_96], %103 {strides = array<i32>} : memref<1x4x8x8xbf16, #tpu.memory_space<vmem>>, vector<1x1x8x8xbf16>,
    %104 = arith.truncf %93 : vector<8x8xf32> to vector<8x8xbf16>
    %c0_97 = arith.constant 0 : index
    %c2_98 = arith.constant 2 : index
    %c0_99 = arith.constant 0 : index
    %c0_100 = arith.constant 0 : index
    %105 = vector.load %arg11[%c0_97, %c2_98, %c0_99, %c0_100] : memref<1x4x8x8xbf16, #tpu.memory_space<vmem>>, vector<1x1x8x8xbf16>
    %106 = vector.shape_cast %105 : vector<1x1x8x8xbf16> to vector<8x8xbf16>
    %107 = vector.shape_cast %104 : vector<8x8xbf16> to vector<1x1x8x8xbf16>
    tpu.vector_store %arg11[%c0_97, %c2_98, %c0_99, %c0_100], %107 {strides = array<i32>} : memref<1x4x8x8xbf16, #tpu.memory_space<vmem>>, vector<1x1x8x8xbf16>,
    %c3 = arith.constant 3 : index
    %c0_101 = arith.constant 0 : index
    %c0_102 = arith.constant 0 : index
    %108 = vector.load %arg3[%c3, %c0_101, %c0_102] : memref<4x32x8xbf16, #tpu.memory_space<vmem>>, vector<1x32x8xbf16>
    %109 = vector.shape_cast %108 : vector<1x32x8xbf16> to vector<32x8xbf16>
    %cst_103 = arith.constant dense<0.000000e+00> : vector<8x8xf32>
    %110 = tpu.matmul %2, %109, %cst_103 {dimension_numbers = #tpu.dot_dimension_numbers<[1], [0], [0], [1], [0, 0, 1, 1], [], []>} : vector<8x32xbf16>, vector<32x8xbf16>, vector<8x8xf32> -> vector<8x8xf32>
    %c3_104 = arith.constant 3 : index
    %c0_105 = arith.constant 0 : index
    %c0_106 = arith.constant 0 : index
    %111 = vector.load %arg4[%c3_104, %c0_105, %c0_106] : memref<4x1x8xf32, #tpu.memory_space<vmem>>, vector<1x1x8xf32>
    %112 = vector.shape_cast %111 : vector<1x1x8xf32> to vector<1x8xf32>
    %113 = vector.broadcast %112 : vector<1x8xf32> to vector<8x8xf32>
    %114 = arith.addf %110, %113 : vector<8x8xf32>
    %c3_107 = arith.constant 3 : index
    %c0_108 = arith.constant 0 : index
    %c0_109 = arith.constant 0 : index
    %115 = vector.load %arg5[%c3_107, %c0_108, %c0_109] : memref<4x32x8xbf16, #tpu.memory_space<vmem>>, vector<1x32x8xbf16>
    %116 = vector.shape_cast %115 : vector<1x32x8xbf16> to vector<32x8xbf16>
    %cst_110 = arith.constant dense<0.000000e+00> : vector<8x8xf32>
    %117 = tpu.matmul %2, %116, %cst_110 {dimension_numbers = #tpu.dot_dimension_numbers<[1], [0], [0], [1], [0, 0, 1, 1], [], []>} : vector<8x32xbf16>, vector<32x8xbf16>, vector<8x8xf32> -> vector<8x8xf32>
    %c3_111 = arith.constant 3 : index
    %c0_112 = arith.constant 0 : index
    %c0_113 = arith.constant 0 : index
    %118 = vector.load %arg6[%c3_111, %c0_112, %c0_113] : memref<4x1x8xf32, #tpu.memory_space<vmem>>, vector<1x1x8xf32>
    %119 = vector.shape_cast %118 : vector<1x1x8xf32> to vector<1x8xf32>
    %120 = vector.broadcast %119 : vector<1x8xf32> to vector<8x8xf32>
    %121 = arith.addf %117, %120 : vector<8x8xf32>
    %c3_114 = arith.constant 3 : index
    %c0_115 = arith.constant 0 : index
    %c0_116 = arith.constant 0 : index
    %122 = vector.load %arg7[%c3_114, %c0_115, %c0_116] : memref<4x32x8xbf16, #tpu.memory_space<vmem>>, vector<1x32x8xbf16>
    %123 = vector.shape_cast %122 : vector<1x32x8xbf16> to vector<32x8xbf16>
    %cst_117 = arith.constant dense<0.000000e+00> : vector<8x8xf32>
    %124 = tpu.matmul %2, %123, %cst_117 {dimension_numbers = #tpu.dot_dimension_numbers<[1], [0], [0], [1], [0, 0, 1, 1], [], []>} : vector<8x32xbf16>, vector<32x8xbf16>, vector<8x8xf32> -> vector<8x8xf32>
    %c3_118 = arith.constant 3 : index
    %c0_119 = arith.constant 0 : index
    %c0_120 = arith.constant 0 : index
    %125 = vector.load %arg8[%c3_118, %c0_119, %c0_120] : memref<4x1x8xf32, #tpu.memory_space<vmem>>, vector<1x1x8xf32>
    %126 = vector.shape_cast %125 : vector<1x1x8xf32> to vector<1x8xf32>
    %127 = vector.broadcast %126 : vector<1x8xf32> to vector<8x8xf32>
    %128 = arith.addf %124, %127 : vector<8x8xf32>
    %cst_121 = arith.constant 0.353553385 : f32
    %129 = vector.broadcast %cst_121 : f32 to vector<8x8xf32>
    %130 = arith.mulf %114, %129 : vector<8x8xf32>
    %131 = arith.truncf %130 : vector<8x8xf32> to vector<8x8xbf16>
    %c0_122 = arith.constant 0 : index
    %c3_123 = arith.constant 3 : index
    %c0_124 = arith.constant 0 : index
    %c0_125 = arith.constant 0 : index
    %132 = vector.load %arg9[%c0_122, %c3_123, %c0_124, %c0_125] : memref<1x4x8x8xbf16, #tpu.memory_space<vmem>>, vector<1x1x8x8xbf16>
    %133 = vector.shape_cast %132 : vector<1x1x8x8xbf16> to vector<8x8xbf16>
    %134 = vector.shape_cast %131 : vector<8x8xbf16> to vector<1x1x8x8xbf16>
    tpu.vector_store %arg9[%c0_122, %c3_123, %c0_124, %c0_125], %134 {strides = array<i32>} : memref<1x4x8x8xbf16, #tpu.memory_space<vmem>>, vector<1x1x8x8xbf16>,
    %135 = arith.truncf %121 : vector<8x8xf32> to vector<8x8xbf16>
    %c0_126 = arith.constant 0 : index
    %c3_127 = arith.constant 3 : index
    %c0_128 = arith.constant 0 : index
    %c0_129 = arith.constant 0 : index
    %136 = vector.load %arg10[%c0_126, %c3_127, %c0_128, %c0_129] : memref<1x4x8x8xbf16, #tpu.memory_space<vmem>>, vector<1x1x8x8xbf16>
    %137 = vector.shape_cast %136 : vector<1x1x8x8xbf16> to vector<8x8xbf16>
    %138 = vector.shape_cast %135 : vector<8x8xbf16> to vector<1x1x8x8xbf16>
    tpu.vector_store %arg10[%c0_126, %c3_127, %c0_128, %c0_129], %138 {strides = array<i32>} : memref<1x4x8x8xbf16, #tpu.memory_space<vmem>>, vector<1x1x8x8xbf16>,
    %139 = arith.truncf %128 : vector<8x8xf32> to vector<8x8xbf16>
    %c0_130 = arith.constant 0 : index
    %c3_131 = arith.constant 3 : index
    %c0_132 = arith.constant 0 : index
    %c0_133 = arith.constant 0 : index
    %140 = vector.load %arg11[%c0_130, %c3_131, %c0_132, %c0_133] : memref<1x4x8x8xbf16, #tpu.memory_space<vmem>>, vector<1x1x8x8xbf16>
    %141 = vector.shape_cast %140 : vector<1x1x8x8xbf16> to vector<8x8xbf16>
    %142 = vector.shape_cast %139 : vector<8x8xbf16> to vector<1x1x8x8xbf16>
    tpu.vector_store %arg11[%c0_130, %c3_131, %c0_132, %c0_133], %142 {strides = array<i32>} : memref<1x4x8x8xbf16, #tpu.memory_space<vmem>>, vector<1x1x8x8xbf16>,
    return
  }
  func.func @transform_0(%arg0: i32, %arg1: i32) -> (i32, i32, i32) {
    %c0_i32 = arith.constant 0 : i32
    %c0_i32_0 = arith.constant 0 : i32
    return %arg0, %arg1, %c0_i32 : i32, i32, i32
  }
  func.func @transform_1(%arg0: i32, %arg1: i32) -> (i32, i32, i32) {
    %c0_i32 = arith.constant 0 : i32
    %c0_i32_0 = arith.constant 0 : i32
    %c0_i32_1 = arith.constant 0 : i32
    %c0_i32_2 = arith.constant 0 : i32
    return %c0_i32, %c0_i32_0, %c0_i32_1 : i32, i32, i32
  }
  func.func @transform_2(%arg0: i32, %arg1: i32) -> (i32, i32, i32) {
    %c0_i32 = arith.constant 0 : i32
    %c0_i32_0 = arith.constant 0 : i32
    %c0_i32_1 = arith.constant 0 : i32
    %c0_i32_2 = arith.constant 0 : i32
    return %c0_i32, %c0_i32_0, %c0_i32_1 : i32, i32, i32
  }
  func.func @transform_3(%arg0: i32, %arg1: i32) -> (i32, i32, i32) {
    %c0_i32 = arith.constant 0 : i32
    %c0_i32_0 = arith.constant 0 : i32
    %c0_i32_1 = arith.constant 0 : i32
    %c0_i32_2 = arith.constant 0 : i32
    return %c0_i32, %c0_i32_0, %c0_i32_1 : i32, i32, i32
  }
  func.func @transform_4(%arg0: i32, %arg1: i32) -> (i32, i32, i32) {
    %c0_i32 = arith.constant 0 : i32
    %c0_i32_0 = arith.constant 0 : i32
    %c0_i32_1 = arith.constant 0 : i32
    %c0_i32_2 = arith.constant 0 : i32
    return %c0_i32, %c0_i32_0, %c0_i32_1 : i32, i32, i32
  }
  func.func @transform_5(%arg0: i32, %arg1: i32) -> (i32, i32, i32) {
    %c0_i32 = arith.constant 0 : i32
    %c0_i32_0 = arith.constant 0 : i32
    %c0_i32_1 = arith.constant 0 : i32
    %c0_i32_2 = arith.constant 0 : i32
    return %c0_i32, %c0_i32_0, %c0_i32_1 : i32, i32, i32
  }
  func.func @transform_6(%arg0: i32, %arg1: i32) -> (i32, i32, i32) {
    %c0_i32 = arith.constant 0 : i32
    %c0_i32_0 = arith.constant 0 : i32
    %c0_i32_1 = arith.constant 0 : i32
    %c0_i32_2 = arith.constant 0 : i32
    return %c0_i32, %c0_i32_0, %c0_i32_1 : i32, i32, i32
  }
  func.func @transform_7(%arg0: i32, %arg1: i32) -> (i32, i32, i32, i32) {
    %c0_i32 = arith.constant 0 : i32
    %c0_i32_0 = arith.constant 0 : i32
    %c0_i32_1 = arith.constant 0 : i32
    return %arg0, %c0_i32, %arg1, %c0_i32_0 : i32, i32, i32, i32
  }
  func.func @transform_8(%arg0: i32, %arg1: i32) -> (i32, i32, i32, i32) {
    %c0_i32 = arith.constant 0 : i32
    %c0_i32_0 = arith.constant 0 : i32
    %c0_i32_1 = arith.constant 0 : i32
    return %arg0, %c0_i32, %arg1, %c0_i32_0 : i32, i32, i32, i32
  }
  func.func @transform_9(%arg0: i32, %arg1: i32) -> (i32, i32, i32, i32) {
    %c0_i32 = arith.constant 0 : i32
    %c0_i32_0 = arith.constant 0 : i32
    %c0_i32_1 = arith.constant 0 : i32
    return %arg0, %c0_i32, %arg1, %c0_i32_0 : i32, i32, i32, i32
  }
}

</mosaic_0001>

<llo_original>
// kernel: tpu_custom_call.1
$region0: #{tpu_custom_call.1}
  #allocation0 [shape = 'u32[]', space=smem, size = 0x4, offset = 0x4, fixed_abs, tag = 'smem constant byte address 0x4 - core index']
  #allocation1 [shape = 'u32[144,128]{1,0:T(1,128)}', space=vmem, size = 0x12000, scoped, tag = 'internal scratch']
  %s0 = inlined_call_operand.hbm [shape: f32[2,8,32], index: 0, kind: input, shape index: {}]
  %s1 = inlined_call_operand.hbm [shape: bf16[4,32,8], index: 1, kind: input, shape index: {}]
  %s2 = inlined_call_operand.hbm [shape: f32[4,1,8], index: 2, kind: input, shape index: {}]
  %s3 = inlined_call_operand.hbm [shape: bf16[4,32,8], index: 3, kind: input, shape index: {}]
  %s4 = inlined_call_operand.hbm [shape: f32[4,1,8], index: 4, kind: input, shape index: {}]
  %s5 = inlined_call_operand.hbm [shape: bf16[4,32,8], index: 5, kind: input, shape index: {}]
  %s6 = inlined_call_operand.hbm [shape: f32[4,1,8], index: 6, kind: input, shape index: {}]
  %s7 = inlined_call_operand.hbm [shape: bf16[2,4,8,8], index: 7, kind: output, shape index: {0}]
  %s8 = inlined_call_operand.hbm [shape: bf16[2,4,8,8], index: 8, kind: output, shape index: {1}]
  %s9 = inlined_call_operand.hbm [shape: bf16[2,4,8,8], index: 9, kind: output, shape index: {2}]
  %10 = xla_tuple %s7, %s8, %s9
  %s11 = sld [smem:[#allocation0]]
  $region105: #{tpu_custom_call.1} parent=0
    _
  %s13 = ssub.s32 1, %s11
  %s14 = scalar_select 0, %s13, %s11
  $region1: #{tpu_custom_call.1} parent=0
    #allocation2 [shape = 'u8[8192]{0}', space=vmem, size = 0x2000, scoped, tag = 'input window, operand 0']
    #allocation3 [shape = 's32[2]{0}', space=sflag, size = 0x8, scoped, tag = 'scoped memory for tpu_custom_call.1']
    #allocation4 [shape = 's32[2]{0}', space=sflag, size = 0x8, scoped, tag = 'scoped memory for tpu_custom_call.1']
    #allocation5 [shape = 'u8[32768]{0}', space=vmem, size = 0x8000, scoped, tag = 'input window, operand 1, single buffered']
    #allocation6 [shape = 's32[1]{0}', space=sflag, size = 0x4, scoped, tag = 'scoped memory for tpu_custom_call.1']
    #allocation7 [shape = 'u8[2048]{0}', space=vmem, size = 0x800, scoped, tag = 'input window, operand 2, single buffered']
    #allocation8 [shape = 'u8[32768]{0}', space=vmem, size = 0x8000, scoped, tag = 'input window, operand 3, single buffered']
    #allocation9 [shape = 's32[1]{0}', space=sflag, size = 0x4, scoped, tag = 'scoped memory for tpu_custom_call.1']
    #allocation10 [shape = 'u8[2048]{0}', space=vmem, size = 0x800, scoped, tag = 'input window, operand 4, single buffered']
    #allocation11 [shape = 'u8[32768]{0}', space=vmem, size = 0x8000, scoped, tag = 'input window, operand 5, single buffered']
    #allocation12 [shape = 's32[1]{0}', space=sflag, size = 0x4, scoped, tag = 'scoped memory for tpu_custom_call.1']
    #allocation13 [shape = 'u8[2048]{0}', space=vmem, size = 0x800, scoped, tag = 'input window, operand 6, single buffered']
    #allocation14 [shape = 'u8[16384]{0}', space=vmem, size = 0x4000, scoped, tag = 'output window, operand 0']
    #allocation15 [shape = 'u8[16384]{0}', space=vmem, size = 0x4000, scoped, tag = 'output window, operand 1']
    #allocation16 [shape = 's32[2]{0}', space=sflag, size = 0x8, scoped, tag = 'scoped memory for tpu_custom_call.1']
    #allocation17 [shape = 'u8[16384]{0}', space=vmem, size = 0x4000, scoped, tag = 'output window, operand 2']
    %15 = vsyncpa [#allocation3], 0
    %s16 = scalar_lea.sflag [#allocation3], 1
    %17 = vsyncpa %s16, 0
    %18 = vsyncpa [#allocation6], 0
    %19 = vsyncpa [#allocation9], 0
    %20 = vsyncpa [#allocation12], 0
    %21 = vsyncpa [#allocation4], 0
    %s22 = scalar_lea.sflag [#allocation4], 1
    %23 = vsyncpa %s22, 0
    %24 = vsyncpa [#allocation16], 0
    %s25 = scalar_lea.sflag [#allocation16], 1
    %26 = vsyncpa %s25, 0
    loop: start=0, step=1, limit=4
    $region2: #{tpu_custom_call.1} parent=1 // loop_pre_header
      _
    $region3: #{tpu_custom_call.1} parent=1 // loop_header
      %s28 = sphi 0, %s32
      %p29 = scmp.ge.s32.totalorder %s28, 4
      %s35 = sphi 0, %s47
      %s36 = sphi 0, %s43
      %s37 = sphi 0, %s35
      %s38 = sphi 0, %s36
      %s39 = sphi 0, %s37
      %s40 = sphi 0, %s38
      %s52 = sphi 0, %s54
      %s55 = sphi 0, %s52
      %s56 = sphi 0, %s55
      %s72 = sphi 0, %s56
      %s76 = sphi 0, %s76
      %s78 = sphi 0, %s76
      %s79 = sphi 0, %s78
      %s93 = sphi 0, %s79
      %s97 = sphi 0, %s97
      %s99 = sphi 0, %s97
      %s100 = sphi 0, %s99
      %s114 = sphi 0, %s100
      %s118 = sphi 0, %s118
      %s120 = sphi 0, %s118
      %s121 = sphi 0, %s120
      %s135 = sphi 0, %s121
      %s139 = sphi 0, %s139
      %s141 = sphi 0, %s139
      %s142 = sphi 0, %s141
      %s156 = sphi 0, %s142
      %s160 = sphi 0, %s160
      %s162 = sphi 0, %s160
      %s163 = sphi 0, %s162
      %s177 = sphi 0, %s163
      %s181 = sphi 0, %s181
      %s183 = sphi 0, %s181
      %s184 = sphi 0, %s183
      %s198 = sphi 0, %s184
      %s206 = sphi 0, %s208
      %s209 = sphi 0, %s206
      %s210 = sphi 0, %s209
      %s226 = sphi 0, %s210
      %s234 = sphi 0, %s236
      %s237 = sphi 0, %s234
      %s238 = sphi 0, %s237
      %s254 = sphi 0, %s238
      %s262 = sphi 0, %s264
      %s265 = sphi 0, %s262
      %s266 = sphi 0, %s265
      %s282 = sphi 0, %s266
    $region4: #{tpu_custom_call.1} parent=1 // loop_header_branch
      %31 = sbr.rel (%p29) target = $region8
    $region5: #{tpu_custom_call.1} parent=1 // loop_body
      %s33 = ssub.s32 %s28, 1
      %s34 = ssub.s32 %s28, 2
      %s41 = sadd.s32 1, %s36
      %p42 = scmp.ge.s32.totalorder %s41, 1
      %s43 = scalar_select %p42, 0, %s41
      %s44 = sadd.s32 1, %s35
      %s45 = scalar_select %p42, %s44, %s35
      %p46 = scmp.ge.s32.totalorder %s45, 2
      %s47 = scalar_select %p46, 0, %s45
      %s48 = ssub.s32 %s35, %s47
      %s49 = ssub.s32 %s36, %s43
      %s50 = sor.u32 %s48, %s49
      %p51 = scmp.eq.s32.totalorder %s50, 0
      %s53 = sadd.s32 %s52, 1
      %s54 = scalar_select %p51, %s52, %s53
      %p57 = pneg %p51
      %p58 = scmp.eq.s32.totalorder %s28, 1
      %p59 = por %p57, %p58
      %p60 = scmp.ne.s32.totalorder %s52, %s55
      %p61 = scmp.eq.s32.totalorder %s28, 0
      %p62 = por %p60, %p61
      %p63 = scmp.ne.s32.totalorder %s52, %s55
      %p64 = scmp.eq.s32.totalorder %s33, 1
      %p65 = por %p63, %p64
      %p66 = scmp.ne.s32.totalorder %s55, %s56
      %p67 = scmp.eq.s32.totalorder %s33, 0
      %p68 = por %p66, %p67
      %p69 = scmp.ne.s32.totalorder %s55, %s56
      %p70 = scmp.eq.s32.totalorder %s34, 1
      %p71 = por %p69, %p70
      %p73 = scmp.ne.s32.totalorder %s56, %s72
      %p74 = scmp.eq.s32.totalorder %s34, 0
      %p75 = por %p73, %p74
      %s77 = sadd.s32 %s76, 1
      %p80 = scmp.eq.s32.totalorder %s28, 1
      %p81 = scmp.ne.s32.totalorder %s76, %s78
      %p82 = scmp.eq.s32.totalorder %s28, 0
      %p83 = por %p81, %p82
      %p84 = scmp.ne.s32.totalorder %s76, %s78
      %p85 = scmp.eq.s32.totalorder %s33, 1
      %p86 = por %p84, %p85
      %p87 = scmp.ne.s32.totalorder %s78, %s79
      %p88 = scmp.eq.s32.totalorder %s33, 0
      %p89 = por %p87, %p88
      %p90 = scmp.ne.s32.totalorder %s78, %s79
      %p91 = scmp.eq.s32.totalorder %s34, 1
      %p92 = por %p90, %p91
      %p94 = scmp.ne.s32.totalorder %s79, %s93
      %p95 = scmp.eq.s32.totalorder %s34, 0
      %p96 = por %p94, %p95
      %s98 = sadd.s32 %s97, 1
      %p101 = scmp.eq.s32.totalorder %s28, 1
      %p102 = scmp.ne.s32.totalorder %s97, %s99
      %p103 = scmp.eq.s32.totalorder %s28, 0
      %p104 = por %p102, %p103
      %p105 = scmp.ne.s32.totalorder %s97, %s99
      %p106 = scmp.eq.s32.totalorder %s33, 1
      %p107 = por %p105, %p106
      %p108 = scmp.ne.s32.totalorder %s99, %s100
      %p109 = scmp.eq.s32.totalorder %s33, 0
      %p110 = por %p108, %p109
      %p111 = scmp.ne.s32.totalorder %s99, %s100
      %p112 = scmp.eq.s32.totalorder %s34, 1
      %p113 = por %p111, %p112
      %p115 = scmp.ne.s32.totalorder %s100, %s114
      %p116 = scmp.eq.s32.totalorder %s34, 0
      %p117 = por %p115, %p116
      %s119 = sadd.s32 %s118, 1
      %p122 = scmp.eq.s32.totalorder %s28, 1
      %p123 = scmp.ne.s32.totalorder %s118, %s120
      %p124 = scmp.eq.s32.totalorder %s28, 0
      %p125 = por %p123, %p124
      %p126 = scmp.ne.s32.totalorder %s118, %s120
      %p127 = scmp.eq.s32.totalorder %s33, 1
      %p128 = por %p126, %p127
      %p129 = scmp.ne.s32.totalorder %s120, %s121
      %p130 = scmp.eq.s32.totalorder %s33, 0
      %p131 = por %p129, %p130
      %p132 = scmp.ne.s32.totalorder %s120, %s121
      %p133 = scmp.eq.s32.totalorder %s34, 1
      %p134 = por %p132, %p133
      %p136 = scmp.ne.s32.totalorder %s121, %s135
      %p137 = scmp.eq.s32.totalorder %s34, 0
      %p138 = por %p136, %p137
      %s140 = sadd.s32 %s139, 1
      %p143 = scmp.eq.s32.totalorder %s28, 1
      %p144 = scmp.ne.s32.totalorder %s139, %s141
      %p145 = scmp.eq.s32.totalorder %s28, 0
      %p146 = por %p144, %p145
      %p147 = scmp.ne.s32.totalorder %s139, %s141
      %p148 = scmp.eq.s32.totalorder %s33, 1
      %p149 = por %p147, %p148
      %p150 = scmp.ne.s32.totalorder %s141, %s142
      %p151 = scmp.eq.s32.totalorder %s33, 0
      %p152 = por %p150, %p151
      %p153 = scmp.ne.s32.totalorder %s141, %s142
      %p154 = scmp.eq.s32.totalorder %s34, 1
      %p155 = por %p153, %p154
      %p157 = scmp.ne.s32.totalorder %s142, %s156
      %p158 = scmp.eq.s32.totalorder %s34, 0
      %p159 = por %p157, %p158
      %s161 = sadd.s32 %s160, 1
      %p164 = scmp.eq.s32.totalorder %s28, 1
      %p165 = scmp.ne.s32.totalorder %s160, %s162
      %p166 = scmp.eq.s32.totalorder %s28, 0
      %p167 = por %p165, %p166
      %p168 = scmp.ne.s32.totalorder %s160, %s162
      %p169 = scmp.eq.s32.totalorder %s33, 1
      %p170 = por %p168, %p169
      %p171 = scmp.ne.s32.totalorder %s162, %s163
      %p172 = scmp.eq.s32.totalorder %s33, 0
      %p173 = por %p171, %p172
      %p174 = scmp.ne.s32.totalorder %s162, %s163
      %p175 = scmp.eq.s32.totalorder %s34, 1
      %p176 = por %p174, %p175
      %p178 = scmp.ne.s32.totalorder %s163, %s177
      %p179 = scmp.eq.s32.totalorder %s34, 0
      %p180 = por %p178, %p179
      %s182 = sadd.s32 %s181, 1
      %p185 = scmp.eq.s32.totalorder %s28, 1
      %p186 = scmp.ne.s32.totalorder %s181, %s183
      %p187 = scmp.eq.s32.totalorder %s28, 0
      %p188 = por %p186, %p187
      %p189 = scmp.ne.s32.totalorder %s181, %s183
      %p190 = scmp.eq.s32.totalorder %s33, 1
      %p191 = por %p189, %p190
      %p192 = scmp.ne.s32.totalorder %s183, %s184
      %p193 = scmp.eq.s32.totalorder %s33, 0
      %p194 = por %p192, %p193
      %p195 = scmp.ne.s32.totalorder %s183, %s184
      %p196 = scmp.eq.s32.totalorder %s34, 1
      %p197 = por %p195, %p196
      %p199 = scmp.ne.s32.totalorder %s184, %s198
      %p200 = scmp.eq.s32.totalorder %s34, 0
      %p201 = por %p199, %p200
      %s202 = ssub.s32 %s35, %s47
      %s203 = ssub.s32 %s36, %s43
      %s204 = sor.u32 %s202, %s203
      %p205 = scmp.eq.s32.totalorder %s204, 0
      %s207 = sadd.s32 %s206, 1
      %s208 = scalar_select %p205, %s206, %s207
      %p211 = pneg %p205
      %p212 = scmp.eq.s32.totalorder %s28, 1
      %p213 = por %p211, %p212
      %p214 = scmp.ne.s32.totalorder %s206, %s209
      %p215 = scmp.eq.s32.totalorder %s28, 0
      %p216 = por %p214, %p215
      %p217 = scmp.ne.s32.totalorder %s206, %s209
      %p218 = scmp.eq.s32.totalorder %s33, 1
      %p219 = por %p217, %p218
      %p220 = scmp.ne.s32.totalorder %s209, %s210
      %p221 = scmp.eq.s32.totalorder %s33, 0
      %p222 = por %p220, %p221
      %p223 = scmp.ne.s32.totalorder %s209, %s210
      %p224 = scmp.eq.s32.totalorder %s34, 1
      %p225 = por %p223, %p224
      %p227 = scmp.ne.s32.totalorder %s210, %s226
      %p228 = scmp.eq.s32.totalorder %s34, 0
      %p229 = por %p227, %p228
      %s230 = ssub.s32 %s35, %s47
      %s231 = ssub.s32 %s36, %s43
      %s232 = sor.u32 %s230, %s231
      %p233 = scmp.eq.s32.totalorder %s232, 0
      %s235 = sadd.s32 %s234, 1
      %s236 = scalar_select %p233, %s234, %s235
      %p239 = pneg %p233
      %p240 = scmp.eq.s32.totalorder %s28, 1
      %p241 = por %p239, %p240
      %p242 = scmp.ne.s32.totalorder %s234, %s237
      %p243 = scmp.eq.s32.totalorder %s28, 0
      %p244 = por %p242, %p243
      %p245 = scmp.ne.s32.totalorder %s234, %s237
      %p246 = scmp.eq.s32.totalorder %s33, 1
      %p247 = por %p245, %p246
      %p248 = scmp.ne.s32.totalorder %s237, %s238
      %p249 = scmp.eq.s32.totalorder %s33, 0
      %p250 = por %p248, %p249
      %p251 = scmp.ne.s32.totalorder %s237, %s238
      %p252 = scmp.eq.s32.totalorder %s34, 1
      %p253 = por %p251, %p252
      %p255 = scmp.ne.s32.totalorder %s238, %s254
      %p256 = scmp.eq.s32.totalorder %s34, 0
      %p257 = por %p255, %p256
      %s258 = ssub.s32 %s35, %s47
      %s259 = ssub.s32 %s36, %s43
      %s260 = sor.u32 %s258, %s259
      %p261 = scmp.eq.s32.totalorder %s260, 0
      %s263 = sadd.s32 %s262, 1
      %s264 = scalar_select %p261, %s262, %s263
      %p267 = pneg %p261
      %p268 = scmp.eq.s32.totalorder %s28, 1
      %p269 = por %p267, %p268
      %p270 = scmp.ne.s32.totalorder %s262, %s265
      %p271 = scmp.eq.s32.totalorder %s28, 0
      %p272 = por %p270, %p271
      %p273 = scmp.ne.s32.totalorder %s262, %s265
      %p274 = scmp.eq.s32.totalorder %s33, 1
      %p275 = por %p273, %p274
      %p276 = scmp.ne.s32.totalorder %s265, %s266
      %p277 = scmp.eq.s32.totalorder %s33, 0
      %p278 = por %p276, %p277
      %p279 = scmp.ne.s32.totalorder %s265, %s266
      %p280 = scmp.eq.s32.totalorder %s34, 1
      %p281 = por %p279, %p280
      %p283 = scmp.ne.s32.totalorder %s266, %s282
      %p284 = scmp.eq.s32.totalorder %s34, 0
      %p285 = por %p283, %p284
      %p286 = scmp.le.s32.totalorder 1, %s28
      %p287 = scmp.lt.s32.totalorder %s28, 3
      %p288 = pnand %p286, %p287
      %p289 = pneg %p288
      // Predicated region
      $region9: #{tpu_custom_call.1} parent=5 // pred_check
        _
      $region10: #{tpu_custom_call.1} parent=5 // pred_check_branch
        %291 = sbr.rel (%p288) target = $region12
      $region11: #{tpu_custom_call.1} parent=5 // pred_region
        %s292 = ssub.s32 %s28, 1
        // Predicated region
        $region13: #{tpu_custom_call.1} parent=11 // pred_check
          %p293 = pneg %p89
        $region14: #{tpu_custom_call.1} parent=11 // pred_check_branch
          %295 = sbr.rel (%p293) target = $region16
        $region15: #{tpu_custom_call.1} parent=11 // pred_region
          %s297 = ssub.s32 1024, 1024
          %298 = vsyncadd [#allocation6], %s297
          %s299 = sshll.u32 [#allocation5], 4
          %s300 = int_to_ptr.vmem [resolvable:$true] %s299
          %305 = dma.hbm_to_vmem [thread:$0]  %s1, 1024, %s300, [#allocation6], 64, 64, 4
        $region16: #{tpu_custom_call.1} parent=11 // pred_fallthru
          _
        // Predicated region
        $region17: #{tpu_custom_call.1} parent=11 // pred_check
          %p306 = pneg %p110
        $region18: #{tpu_custom_call.1} parent=11 // pred_check_branch
          %308 = sbr.rel (%p306) target = $region20
        $region19: #{tpu_custom_call.1} parent=11 // pred_region
          %s310 = ssub.s32 64, 64
          %311 = vsyncadd [#allocation6], %s310
          %s312 = sshll.u32 [#allocation7], 4
          %s313 = int_to_ptr.vmem [resolvable:$true] %s312
          %318 = dma.hbm_to_vmem [thread:$0]  %s2, 64, %s313, [#allocation6], 16, 16, 1
        $region20: #{tpu_custom_call.1} parent=11 // pred_fallthru
          _
        // Predicated region
        $region21: #{tpu_custom_call.1} parent=11 // pred_check
          %p319 = pneg %p131
        $region22: #{tpu_custom_call.1} parent=11 // pred_check_branch
          %321 = sbr.rel (%p319) target = $region24
        $region23: #{tpu_custom_call.1} parent=11 // pred_region
          %s323 = ssub.s32 1024, 1024
          %324 = vsyncadd [#allocation9], %s323
          %s325 = sshll.u32 [#allocation8], 4
          %s326 = int_to_ptr.vmem [resolvable:$true] %s325
          %331 = dma.hbm_to_vmem [thread:$0]  %s3, 1024, %s326, [#allocation9], 64, 64, 4
        $region24: #{tpu_custom_call.1} parent=11 // pred_fallthru
          _
        // Predicated region
        $region25: #{tpu_custom_call.1} parent=11 // pred_check
          %p332 = pneg %p152
        $region26: #{tpu_custom_call.1} parent=11 // pred_check_branch
          %334 = sbr.rel (%p332) target = $region28
        $region27: #{tpu_custom_call.1} parent=11 // pred_region
          %s336 = ssub.s32 64, 64
          %337 = vsyncadd [#allocation9], %s336
          %s338 = sshll.u32 [#allocation10], 4
          %s339 = int_to_ptr.vmem [resolvable:$true] %s338
          %344 = dma.hbm_to_vmem [thread:$0]  %s4, 64, %s339, [#allocation9], 16, 16, 1
        $region28: #{tpu_custom_call.1} parent=11 // pred_fallthru
          _
        // Predicated region
        $region29: #{tpu_custom_call.1} parent=11 // pred_check
          %p345 = pneg %p173
        $region30: #{tpu_custom_call.1} parent=11 // pred_check_branch
          %347 = sbr.rel (%p345) target = $region32
        $region31: #{tpu_custom_call.1} parent=11 // pred_region
          %s349 = ssub.s32 1024, 1024
          %350 = vsyncadd [#allocation12], %s349
          %s351 = sshll.u32 [#allocation11], 4
          %s352 = int_to_ptr.vmem [resolvable:$true] %s351
          %357 = dma.hbm_to_vmem [thread:$0]  %s5, 1024, %s352, [#allocation12], 64, 64, 4
        $region32: #{tpu_custom_call.1} parent=11 // pred_fallthru
          _
        // Predicated region
        $region33: #{tpu_custom_call.1} parent=11 // pred_check
          %p358 = pneg %p194
        $region34: #{tpu_custom_call.1} parent=11 // pred_check_branch
          %360 = sbr.rel (%p358) target = $region36
        $region35: #{tpu_custom_call.1} parent=11 // pred_region
          %s362 = ssub.s32 64, 64
          %363 = vsyncadd [#allocation12], %s362
          %s364 = sshll.u32 [#allocation13], 4
          %s365 = int_to_ptr.vmem [resolvable:$true] %s364
          %370 = dma.hbm_to_vmem [thread:$0]  %s6, 64, %s365, [#allocation12], 16, 16, 1
        $region36: #{tpu_custom_call.1} parent=11 // pred_fallthru
          _
      $region12: #{tpu_custom_call.1} parent=5 // pred_fallthru
        _
      %p371 = scmp.lt.s32.totalorder %s28, 2
      // Predicated region
      $region37: #{tpu_custom_call.1} parent=5 // pred_check
        %p372 = pneg %p371
      $region38: #{tpu_custom_call.1} parent=5 // pred_check_branch
        %374 = sbr.rel (%p372) target = $region40
      $region39: #{tpu_custom_call.1} parent=5 // pred_region
        // Predicated region
        $region41: #{tpu_custom_call.1} parent=39 // pred_check
          %p375 = pneg %p62
        $region42: #{tpu_custom_call.1} parent=39 // pred_check_branch
          %377 = sbr.rel (%p375) target = $region44
        $region43: #{tpu_custom_call.1} parent=39 // pred_region
          %s378 = sand.u32 %s52, 1
          %s379 = scalar_lea.sflag [#allocation3], %s378
          %s380 = sand.u32 %s52, 1
          %s381 = smul.addr %s380, 8
          %s382 = scalar_lea.vmem [#allocation2], %s381
          %s384 = ssub.s32 128, 128
          %385 = vsyncadd %s379, %s384
          %s386 = sadd.s32 %s36, %s35
          %s387 = smul.addr %s386, 128
          %s388 = scalar_lea.hbm %s0, %s387
          %s390 = sshll.u32 %s382, 4
          %s391 = int_to_ptr.vmem [resolvable:$true] %s390
          %393 = dma.hbm_to_vmem [thread:$0]  %s388, 128, %s391, %s379
        $region44: #{tpu_custom_call.1} parent=39 // pred_fallthru
          _
      $region40: #{tpu_custom_call.1} parent=5 // pred_fallthru
        _
      %p394 = scmp.le.s32.totalorder 1, %s28
      %p395 = scmp.lt.s32.totalorder %s28, 3
      %p396 = pnand %p394, %p395
      %p397 = pneg %p396
      // Predicated region
      $region45: #{tpu_custom_call.1} parent=5 // pred_check
        _
      $region46: #{tpu_custom_call.1} parent=5 // pred_check_branch
        %399 = sbr.rel (%p396) target = $region48
      $region47: #{tpu_custom_call.1} parent=5 // pred_region
        %s400 = ssub.s32 %s28, 1
        %s401 = sand.u32 %s55, 1
        %s402 = scalar_lea.sflag [#allocation3], %s401
        %s403 = sand.u32 %s55, 1
        %s404 = smul.addr %s403, 8
        %s405 = scalar_lea.vmem [#allocation2], %s404
        // Predicated region
        $region49: #{tpu_custom_call.1} parent=47 // pred_check
          %p406 = pneg %p68
        $region50: #{tpu_custom_call.1} parent=47 // pred_check_branch
          %408 = sbr.rel (%p406) target = $region52
        $region51: #{tpu_custom_call.1} parent=47 // pred_region
          %409 = dma.done %s402, 128
        $region52: #{tpu_custom_call.1} parent=47 // pred_fallthru
          _
        // Predicated region
        $region53: #{tpu_custom_call.1} parent=47 // pred_check
          %p410 = pneg %p89
        $region54: #{tpu_custom_call.1} parent=47 // pred_check_branch
          %412 = sbr.rel (%p410) target = $region56
        $region55: #{tpu_custom_call.1} parent=47 // pred_region
          %413 = dma.done [#allocation6], 1024
        $region56: #{tpu_custom_call.1} parent=47 // pred_fallthru
          _
        // Predicated region
        $region57: #{tpu_custom_call.1} parent=47 // pred_check
          %p414 = pneg %p110
        $region58: #{tpu_custom_call.1} parent=47 // pred_check_branch
          %416 = sbr.rel (%p414) target = $region60
        $region59: #{tpu_custom_call.1} parent=47 // pred_region
          %417 = dma.done [#allocation6], 64
        $region60: #{tpu_custom_call.1} parent=47 // pred_fallthru
          _
        // Predicated region
        $region61: #{tpu_custom_call.1} parent=47 // pred_check
          %p418 = pneg %p131
        $region62: #{tpu_custom_call.1} parent=47 // pred_check_branch
          %420 = sbr.rel (%p418) target = $region64
        $region63: #{tpu_custom_call.1} parent=47 // pred_region
          %421 = dma.done [#allocation9], 1024
        $region64: #{tpu_custom_call.1} parent=47 // pred_fallthru
          _
        // Predicated region
        $region65: #{tpu_custom_call.1} parent=47 // pred_check
          %p422 = pneg %p152
        $region66: #{tpu_custom_call.1} parent=47 // pred_check_branch
          %424 = sbr.rel (%p422) target = $region68
        $region67: #{tpu_custom_call.1} parent=47 // pred_region
          %425 = dma.done [#allocation9], 64
        $region68: #{tpu_custom_call.1} parent=47 // pred_fallthru
          _
        // Predicated region
        $region69: #{tpu_custom_call.1} parent=47 // pred_check
          %p426 = pneg %p173
        $region70: #{tpu_custom_call.1} parent=47 // pred_check_branch
          %428 = sbr.rel (%p426) target = $region72
        $region71: #{tpu_custom_call.1} parent=47 // pred_region
          %429 = dma.done [#allocation12], 1024
        $region72: #{tpu_custom_call.1} parent=47 // pred_fallthru
          _
        // Predicated region
        $region73: #{tpu_custom_call.1} parent=47 // pred_check
          %p430 = pneg %p194
        $region74: #{tpu_custom_call.1} parent=47 // pred_check_branch
          %432 = sbr.rel (%p430) target = $region76
        $region75: #{tpu_custom_call.1} parent=47 // pred_region
          %433 = dma.done [#allocation12], 64
        $region76: #{tpu_custom_call.1} parent=47 // pred_fallthru
          _
        %s434 = sand.u32 %s55, 1
        %s435 = scalar_lea.sflag [#allocation3], %s434
        %s436 = sand.u32 %s55, 1
        %s437 = smul.addr %s436, 8
        %s438 = scalar_lea.vmem [#allocation2], %s437
        %p439 = pneg %p68
        %p440 = pneg %p65
        %p441 = pneg %p89
        %p442 = pneg %p86
        %p443 = pneg %p110
        %p444 = pneg %p107
        %p445 = pneg %p131
        %p446 = pneg %p128
        %p447 = pneg %p152
        %p448 = pneg %p149
        %p449 = pneg %p173
        %p450 = pneg %p170
        %p451 = pneg %p194
        %p452 = pneg %p191
        %p453 = pneg %p222
        %p454 = pneg %p219
        %s455 = sand.u32 %s209, 1
        %s456 = scalar_lea.sflag [#allocation4], %s455
        %s457 = sand.u32 %s209, 1
        %s458 = smul.addr %s457, 16
        %s459 = scalar_lea.vmem [#allocation14], %s458
        %p460 = pneg %p250
        %p461 = pneg %p247
        %s462 = sand.u32 %s33, 1
        %s463 = scalar_lea.sflag [#allocation16], %s462
        %s464 = sand.u32 %s237, 1
        %s465 = smul.addr %s464, 16
        %s466 = scalar_lea.vmem [#allocation15], %s465
        %p467 = pneg %p278
        %p468 = pneg %p275
        %s469 = sand.u32 %s33, 1
        %s470 = scalar_lea.sflag [#allocation16], %s469
        %s471 = sand.u32 %s265, 1
        %s472 = smul.addr %s471, 16
        %s473 = scalar_lea.vmem [#allocation17], %s472
        %v475 = vld [vmem:[%s405] sm:$0xff]
        %v476 = vpack.c.bf16 %v475, %v475
        %v477 = vld [vmem:[#allocation5] sm:$0xf]
        %v478 = vld [vmem:[#allocation5 + $0x4] sm:$0xf]
        %v479 = vld [vmem:[#allocation5 + $0x8] sm:$0xf]
        %v480 = vld [vmem:[#allocation5 + $0xc] sm:$0xf]
        %v481 = vld [vmem:[#allocation7] sm:$0x1]
        %v483 = vlaneseq
        %v484 = vshrl.u32 %v483, 7
        %v485 = vsub.s32 0, %v484
        %v486 = vrot.slane %v481, %v485
        %v492 = vunpack.c.l.b16 %v477
        %v493 = vunpack.c.l.b16 %v478
        %v494 = vunpack.c.l.b16 %v479
        %v495 = vunpack.c.l.b16 %v480
        %v496 = vpack.c.b16 %v493, %v492
        %v497 = vpack.c.b16 %v495, %v494
        %vm500 = vcmask 261120
        %v502 = vsel %vm500, %v476, 0
        %504 = vmatprep.subr.bf16.mxu0 0
        %505 = vmatpush1.bf16.msra.mxu0 %v496
        %506 = vmatprep.subr.bf16.mxu0 0
        %507 = vmatpush1.bf16.msra.mxu0 %v497
        %508 = vmatprep.subr.bf16.mxu0 0
        %509 = vmatpush1.bf16.msra.mxu0 0
        %510 = vmatprep.subr.bf16.mxu0 0
        %511 = vmatpush1.bf16.msra.mxu0 0
        %512 = vmatprep.subr.bf16.mxu0 0
        %513 = vmatpush1.bf16.msra.mxu0 0
        %514 = vmatprep.subr.bf16.mxu0 0
        %515 = vmatpush1.bf16.msra.mxu0 0
        %516 = vmatprep.subr.bf16.mxu0 0
        %517 = vmatpush1.bf16.msra.mxu0 0
        %518 = vmatprep.subr.bf16.mxu0 0
        %519 = vmatpush1.bf16.msra.mxu0 0
        %520 = vmatprep.subr.bf16.mxu0 0
        %521 = vmatpush1.bf16.msra.mxu0 0
        %522 = vmatprep.subr.bf16.mxu0 0
        %523 = vmatpush1.bf16.msra.mxu0 0
        %524 = vmatprep.subr.bf16.mxu0 0
        %525 = vmatpush1.bf16.msra.mxu0 0
        %526 = vmatprep.subr.bf16.mxu0 0
        %527 = vmatpush1.bf16.msra.mxu0 0
        %528 = vmatprep.subr.bf16.mxu0 0
        %529 = vmatpush1.bf16.msra.mxu0 0
        %530 = vmatprep.subr.bf16.mxu0 0
        %531 = vmatpush1.bf16.msra.mxu0 0
        %532 = vmatprep.subr.bf16.mxu0 0
        %533 = vmatpush1.bf16.msra.mxu0 0
        %534 = vmatprep.subr.bf16.mxu0 0
        %535 = vmatpush1.bf16.msra.mxu0 0
        %536 = vmatprep.mubr.bf16.mxu0 0
        %537 = vmatmul.mubr.bf16.gmra.mrb[0].mxu0 %v502
        %v538 = vpop.f32.mrb[0].mxu0
        %v539 = vadd.f32 %v486, %v538
        %v540 = vpop.f32.mrb[0].mxu0
        %v541 = vpop.f32.mrb[0].mxu0
        %v542 = vpop.f32.mrb[0].mxu0
        %543 = vdwg.mxu0
        %v544 = vld [vmem:[#allocation8] sm:$0xf]
        %v545 = vld [vmem:[#allocation8 + $0x4] sm:$0xf]
        %v546 = vld [vmem:[#allocation8 + $0x8] sm:$0xf]
        %v547 = vld [vmem:[#allocation8 + $0xc] sm:$0xf]
        %v548 = vld [vmem:[#allocation10] sm:$0x1]
        %v550 = vlaneseq
        %v551 = vshrl.u32 %v550, 7
        %v552 = vsub.s32 0, %v551
        %v553 = vrot.slane %v548, %v552
        %v559 = vunpack.c.l.b16 %v544
        %v560 = vunpack.c.l.b16 %v545
        %v561 = vunpack.c.l.b16 %v546
        %v562 = vunpack.c.l.b16 %v547
        %v563 = vpack.c.b16 %v560, %v559
        %v564 = vpack.c.b16 %v562, %v561
        %567 = vmatprep.subr.bf16.mxu0 0
        %568 = vmatpush1.bf16.msra.mxu0 %v563
        %569 = vmatprep.subr.bf16.mxu0 0
        %570 = vmatpush1.bf16.msra.mxu0 %v564
        %571 = vmatprep.subr.bf16.mxu0 0
        %572 = vmatpush1.bf16.msra.mxu0 0
        %573 = vmatprep.subr.bf16.mxu0 0
        %574 = vmatpush1.bf16.msra.mxu0 0
        %575 = vmatprep.subr.bf16.mxu0 0
        %576 = vmatpush1.bf16.msra.mxu0 0
        %577 = vmatprep.subr.bf16.mxu0 0
        %578 = vmatpush1.bf16.msra.mxu0 0
        %579 = vmatprep.subr.bf16.mxu0 0
        %580 = vmatpush1.bf16.msra.mxu0 0
        %581 = vmatprep.subr.bf16.mxu0 0
        %582 = vmatpush1.bf16.msra.mxu0 0
        %583 = vmatprep.subr.bf16.mxu0 0
        %584 = vmatpush1.bf16.msra.mxu0 0
        %585 = vmatprep.subr.bf16.mxu0 0
        %586 = vmatpush1.bf16.msra.mxu0 0
        %587 = vmatprep.subr.bf16.mxu0 0
        %588 = vmatpush1.bf16.msra.mxu0 0
        %589 = vmatprep.subr.bf16.mxu0 0
        %590 = vmatpush1.bf16.msra.mxu0 0
        %591 = vmatprep.subr.bf16.mxu0 0
        %592 = vmatpush1.bf16.msra.mxu0 0
        %593 = vmatprep.subr.bf16.mxu0 0
        %594 = vmatpush1.bf16.msra.mxu0 0
        %595 = vmatprep.subr.bf16.mxu0 0
        %596 = vmatpush1.bf16.msra.mxu0 0
        %597 = vmatprep.subr.bf16.mxu0 0
        %598 = vmatpush1.bf16.msra.mxu0 0
        %599 = vmatprep.mubr.bf16.mxu0 0
        %600 = vmatmul.mubr.bf16.gmra.mrb[0].mxu0 %v502
        %v601 = vpop.f32.mrb[0].mxu0
        %v602 = vadd.f32 %v553, %v601
        %v603 = vpop.f32.mrb[0].mxu0
        %v604 = vpop.f32.mrb[0].mxu0
        %v605 = vpop.f32.mrb[0].mxu0
        %606 = vdwg.mxu0
        %v607 = vld [vmem:[#allocation11] sm:$0xf]
        %v608 = vld [vmem:[#allocation11 + $0x4] sm:$0xf]
        %v609 = vld [vmem:[#allocation11 + $0x8] sm:$0xf]
        %v610 = vld [vmem:[#allocation11 + $0xc] sm:$0xf]
        %v611 = vld [vmem:[#allocation13] sm:$0x1]
        %v613 = vlaneseq
        %v614 = vshrl.u32 %v613, 7
        %v615 = vsub.s32 0, %v614
        %v616 = vrot.slane %v611, %v615
        %v622 = vunpack.c.l.b16 %v607
        %v623 = vunpack.c.l.b16 %v608
        %v624 = vunpack.c.l.b16 %v609
        %v625 = vunpack.c.l.b16 %v610
        %v626 = vpack.c.b16 %v623, %v622
        %v627 = vpack.c.b16 %v625, %v624
        %630 = vmatprep.subr.bf16.mxu0 0
        %631 = vmatpush1.bf16.msra.mxu0 %v626
        %632 = vmatprep.subr.bf16.mxu0 0
        %633 = vmatpush1.bf16.msra.mxu0 %v627
        %634 = vmatprep.subr.bf16.mxu0 0
        %635 = vmatpush1.bf16.msra.mxu0 0
        %636 = vmatprep.subr.bf16.mxu0 0
        %637 = vmatpush1.bf16.msra.mxu0 0
        %638 = vmatprep.subr.bf16.mxu0 0
        %639 = vmatpush1.bf16.msra.mxu0 0
        %640 = vmatprep.subr.bf16.mxu0 0
        %641 = vmatpush1.bf16.msra.mxu0 0
        %642 = vmatprep.subr.bf16.mxu0 0
        %643 = vmatpush1.bf16.msra.mxu0 0
        %644 = vmatprep.subr.bf16.mxu0 0
        %645 = vmatpush1.bf16.msra.mxu0 0
        %646 = vmatprep.subr.bf16.mxu0 0
        %647 = vmatpush1.bf16.msra.mxu0 0
        %648 = vmatprep.subr.bf16.mxu0 0
        %649 = vmatpush1.bf16.msra.mxu0 0
        %650 = vmatprep.subr.bf16.mxu0 0
        %651 = vmatpush1.bf16.msra.mxu0 0
        %652 = vmatprep.subr.bf16.mxu0 0
        %653 = vmatpush1.bf16.msra.mxu0 0
        %654 = vmatprep.subr.bf16.mxu0 0
        %655 = vmatpush1.bf16.msra.mxu0 0
        %656 = vmatprep.subr.bf16.mxu0 0
        %657 = vmatpush1.bf16.msra.mxu0 0
        %658 = vmatprep.subr.bf16.mxu0 0
        %659 = vmatpush1.bf16.msra.mxu0 0
        %660 = vmatprep.subr.bf16.mxu0 0
        %661 = vmatpush1.bf16.msra.mxu0 0
        %662 = vmatprep.mubr.bf16.mxu0 0
        %663 = vmatmul.mubr.bf16.gmra.mrb[0].mxu0 %v502
        %v664 = vpop.f32.mrb[0].mxu0
        %v665 = vadd.f32 %v616, %v664
        %v666 = vpop.f32.mrb[0].mxu0
        %v667 = vpop.f32.mrb[0].mxu0
        %v668 = vpop.f32.mrb[0].mxu0
        %669 = vdwg.mxu0
        %v670 = vmul.f32 %v539, 0.35355338
        %v671 = vpack.c.bf16 %v670, %v670
        %vm672 = vcmask 60416
        %673 = vst.msk [vmem:[%s459] sm:$0xf] %vm672, %v671
        %v674 = vpack.c.bf16 %v602, %v602
        %675 = vst.msk [vmem:[%s466] sm:$0xf] %vm672, %v674
        %v676 = vpack.c.bf16 %v665, %v665
        %677 = vst.msk [vmem:[%s473] sm:$0xf] %vm672, %v676
        %s678 = scalar_lea.vmem [#allocation5], 16
        %v679 = vld [vmem:[%s678] sm:$0xf]
        %v680 = vld [vmem:[%s678 + $0x4] sm:$0xf]
        %v681 = vld [vmem:[%s678 + $0x8] sm:$0xf]
        %v682 = vld [vmem:[%s678 + $0xc] sm:$0xf]
        %s683 = scalar_lea.vmem [#allocation7], 1
        %v684 = vld [vmem:[%s683] sm:$0x1]
        %v686 = vlaneseq
        %v687 = vshrl.u32 %v686, 7
        %v688 = vsub.s32 0, %v687
        %v689 = vrot.slane %v684, %v688
        %v695 = vunpack.c.l.b16 %v679
        %v696 = vunpack.c.l.b16 %v680
        %v697 = vunpack.c.l.b16 %v681
        %v698 = vunpack.c.l.b16 %v682
        %v699 = vpack.c.b16 %v696, %v695
        %v700 = vpack.c.b16 %v698, %v697
        %703 = vmatprep.subr.bf16.mxu0 0
        %704 = vmatpush1.bf16.msra.mxu0 %v699
        %705 = vmatprep.subr.bf16.mxu0 0
        %706 = vmatpush1.bf16.msra.mxu0 %v700
        %707 = vmatprep.subr.bf16.mxu0 0
        %708 = vmatpush1.bf16.msra.mxu0 0
        %709 = vmatprep.subr.bf16.mxu0 0
        %710 = vmatpush1.bf16.msra.mxu0 0
        %711 = vmatprep.subr.bf16.mxu0 0
        %712 = vmatpush1.bf16.msra.mxu0 0
        %713 = vmatprep.subr.bf16.mxu0 0
        %714 = vmatpush1.bf16.msra.mxu0 0
        %715 = vmatprep.subr.bf16.mxu0 0
        %716 = vmatpush1.bf16.msra.mxu0 0
        %717 = vmatprep.subr.bf16.mxu0 0
        %718 = vmatpush1.bf16.msra.mxu0 0
        %719 = vmatprep.subr.bf16.mxu0 0
        %720 = vmatpush1.bf16.msra.mxu0 0
        %721 = vmatprep.subr.bf16.mxu0 0
        %722 = vmatpush1.bf16.msra.mxu0 0
        %723 = vmatprep.subr.bf16.mxu0 0
        %724 = vmatpush1.bf16.msra.mxu0 0
        %725 = vmatprep.subr.bf16.mxu0 0
        %726 = vmatpush1.bf16.msra.mxu0 0
        %727 = vmatprep.subr.bf16.mxu0 0
        %728 = vmatpush1.bf16.msra.mxu0 0
        %729 = vmatprep.subr.bf16.mxu0 0
        %730 = vmatpush1.bf16.msra.mxu0 0
        %731 = vmatprep.subr.bf16.mxu0 0
        %732 = vmatpush1.bf16.msra.mxu0 0
        %733 = vmatprep.subr.bf16.mxu0 0
        %734 = vmatpush1.bf16.msra.mxu0 0
        %735 = vmatprep.mubr.bf16.mxu0 0
        %736 = vmatmul.mubr.bf16.gmra.mrb[0].mxu0 %v502
        %v737 = vpop.f32.mrb[0].mxu0
        %v738 = vadd.f32 %v689, %v737
        %v739 = vpop.f32.mrb[0].mxu0
        %v740 = vpop.f32.mrb[0].mxu0
        %v741 = vpop.f32.mrb[0].mxu0
        %742 = vdwg.mxu0
        %s743 = scalar_lea.vmem [#allocation8], 16
        %v744 = vld [vmem:[%s743] sm:$0xf]
        %v745 = vld [vmem:[%s743 + $0x4] sm:$0xf]
        %v746 = vld [vmem:[%s743 + $0x8] sm:$0xf]
        %v747 = vld [vmem:[%s743 + $0xc] sm:$0xf]
        %s748 = scalar_lea.vmem [#allocation10], 1
        %v749 = vld [vmem:[%s748] sm:$0x1]
        %v751 = vlaneseq
        %v752 = vshrl.u32 %v751, 7
        %v753 = vsub.s32 0, %v752
        %v754 = vrot.slane %v749, %v753
        %v760 = vunpack.c.l.b16 %v744
        %v761 = vunpack.c.l.b16 %v745
        %v762 = vunpack.c.l.b16 %v746
        %v763 = vunpack.c.l.b16 %v747
        %v764 = vpack.c.b16 %v761, %v760
        %v765 = vpack.c.b16 %v763, %v762
        %768 = vmatprep.subr.bf16.mxu0 0
        %769 = vmatpush1.bf16.msra.mxu0 %v764
        %770 = vmatprep.subr.bf16.mxu0 0
        %771 = vmatpush1.bf16.msra.mxu0 %v765
        %772 = vmatprep.subr.bf16.mxu0 0
        %773 = vmatpush1.bf16.msra.mxu0 0
        %774 = vmatprep.subr.bf16.mxu0 0
        %775 = vmatpush1.bf16.msra.mxu0 0
        %776 = vmatprep.subr.bf16.mxu0 0
        %777 = vmatpush1.bf16.msra.mxu0 0
        %778 = vmatprep.subr.bf16.mxu0 0
        %779 = vmatpush1.bf16.msra.mxu0 0
        %780 = vmatprep.subr.bf16.mxu0 0
        %781 = vmatpush1.bf16.msra.mxu0 0
        %782 = vmatprep.subr.bf16.mxu0 0
        %783 = vmatpush1.bf16.msra.mxu0 0
        %784 = vmatprep.subr.bf16.mxu0 0
        %785 = vmatpush1.bf16.msra.mxu0 0
        %786 = vmatprep.subr.bf16.mxu0 0
        %787 = vmatpush1.bf16.msra.mxu0 0
        %788 = vmatprep.subr.bf16.mxu0 0
        %789 = vmatpush1.bf16.msra.mxu0 0
        %790 = vmatprep.subr.bf16.mxu0 0
        %791 = vmatpush1.bf16.msra.mxu0 0
        %792 = vmatprep.subr.bf16.mxu0 0
        %793 = vmatpush1.bf16.msra.mxu0 0
        %794 = vmatprep.subr.bf16.mxu0 0
        %795 = vmatpush1.bf16.msra.mxu0 0
        %796 = vmatprep.subr.bf16.mxu0 0
        %797 = vmatpush1.bf16.msra.mxu0 0
        %798 = vmatprep.subr.bf16.mxu0 0
        %799 = vmatpush1.bf16.msra.mxu0 0
        %800 = vmatprep.mubr.bf16.mxu0 0
        %801 = vmatmul.mubr.bf16.gmra.mrb[0].mxu0 %v502
        %v802 = vpop.f32.mrb[0].mxu0
        %v803 = vadd.f32 %v754, %v802
        %v804 = vpop.f32.mrb[0].mxu0
        %v805 = vpop.f32.mrb[0].mxu0
        %v806 = vpop.f32.mrb[0].mxu0
        %807 = vdwg.mxu0
        %s808 = scalar_lea.vmem [#allocation11], 16
        %v809 = vld [vmem:[%s808] sm:$0xf]
        %v810 = vld [vmem:[%s808 + $0x4] sm:$0xf]
        %v811 = vld [vmem:[%s808 + $0x8] sm:$0xf]
        %v812 = vld [vmem:[%s808 + $0xc] sm:$0xf]
        %s813 = scalar_lea.vmem [#allocation13], 1
        %v814 = vld [vmem:[%s813] sm:$0x1]
        %v816 = vlaneseq
        %v817 = vshrl.u32 %v816, 7
        %v818 = vsub.s32 0, %v817
        %v819 = vrot.slane %v814, %v818
        %v825 = vunpack.c.l.b16 %v809
        %v826 = vunpack.c.l.b16 %v810
        %v827 = vunpack.c.l.b16 %v811
        %v828 = vunpack.c.l.b16 %v812
        %v829 = vpack.c.b16 %v826, %v825
        %v830 = vpack.c.b16 %v828, %v827
        %833 = vmatprep.subr.bf16.mxu0 0
        %834 = vmatpush1.bf16.msra.mxu0 %v829
        %835 = vmatprep.subr.bf16.mxu0 0
        %836 = vmatpush1.bf16.msra.mxu0 %v830
        %837 = vmatprep.subr.bf16.mxu0 0
        %838 = vmatpush1.bf16.msra.mxu0 0
        %839 = vmatprep.subr.bf16.mxu0 0
        %840 = vmatpush1.bf16.msra.mxu0 0
        %841 = vmatprep.subr.bf16.mxu0 0
        %842 = vmatpush1.bf16.msra.mxu0 0
        %843 = vmatprep.subr.bf16.mxu0 0
        %844 = vmatpush1.bf16.msra.mxu0 0
        %845 = vmatprep.subr.bf16.mxu0 0
        %846 = vmatpush1.bf16.msra.mxu0 0
        %847 = vmatprep.subr.bf16.mxu0 0
        %848 = vmatpush1.bf16.msra.mxu0 0
        %849 = vmatprep.subr.bf16.mxu0 0
        %850 = vmatpush1.bf16.msra.mxu0 0
        %851 = vmatprep.subr.bf16.mxu0 0
        %852 = vmatpush1.bf16.msra.mxu0 0
        %853 = vmatprep.subr.bf16.mxu0 0
        %854 = vmatpush1.bf16.msra.mxu0 0
        %855 = vmatprep.subr.bf16.mxu0 0
        %856 = vmatpush1.bf16.msra.mxu0 0
        %857 = vmatprep.subr.bf16.mxu0 0
        %858 = vmatpush1.bf16.msra.mxu0 0
        %859 = vmatprep.subr.bf16.mxu0 0
        %860 = vmatpush1.bf16.msra.mxu0 0
        %861 = vmatprep.subr.bf16.mxu0 0
        %862 = vmatpush1.bf16.msra.mxu0 0
        %863 = vmatprep.subr.bf16.mxu0 0
        %864 = vmatpush1.bf16.msra.mxu0 0
        %865 = vmatprep.mubr.bf16.mxu0 0
        %866 = vmatmul.mubr.bf16.gmra.mrb[0].mxu0 %v502
        %v867 = vpop.f32.mrb[0].mxu0
        %v868 = vadd.f32 %v819, %v867
        %v869 = vpop.f32.mrb[0].mxu0
        %v870 = vpop.f32.mrb[0].mxu0
        %v871 = vpop.f32.mrb[0].mxu0
        %872 = vdwg.mxu0
        %v873 = vmul.f32 %v738, 0.35355338
        %v874 = vpack.c.bf16 %v873, %v873
        %s875 = scalar_lea.vmem %s459, 4 [#allocation14]
        %876 = vst.msk [vmem:[%s875] sm:$0xf] %vm672, %v874
        %v877 = vpack.c.bf16 %v803, %v803
        %s878 = scalar_lea.vmem %s466, 4 [#allocation15]
        %879 = vst.msk [vmem:[%s878] sm:$0xf] %vm672, %v877
        %v880 = vpack.c.bf16 %v868, %v868
        %s881 = scalar_lea.vmem %s473, 4 [#allocation17]
        %882 = vst.msk [vmem:[%s881] sm:$0xf] %vm672, %v880
        %s883 = scalar_lea.vmem [#allocation5], 32
        %v884 = vld [vmem:[%s883] sm:$0xf]
        %v885 = vld [vmem:[%s883 + $0x4] sm:$0xf]
        %v886 = vld [vmem:[%s883 + $0x8] sm:$0xf]
        %v887 = vld [vmem:[%s883 + $0xc] sm:$0xf]
        %s888 = scalar_lea.vmem [#allocation7], 2
        %v889 = vld [vmem:[%s888] sm:$0x1]
        %v891 = vlaneseq
        %v892 = vshrl.u32 %v891, 7
        %v893 = vsub.s32 0, %v892
        %v894 = vrot.slane %v889, %v893
        %v900 = vunpack.c.l.b16 %v884
        %v901 = vunpack.c.l.b16 %v885
        %v902 = vunpack.c.l.b16 %v886
        %v903 = vunpack.c.l.b16 %v887
        %v904 = vpack.c.b16 %v901, %v900
        %v905 = vpack.c.b16 %v903, %v902
        %908 = vmatprep.subr.bf16.mxu0 0
        %909 = vmatpush1.bf16.msra.mxu0 %v904
        %910 = vmatprep.subr.bf16.mxu0 0
        %911 = vmatpush1.bf16.msra.mxu0 %v905
        %912 = vmatprep.subr.bf16.mxu0 0
        %913 = vmatpush1.bf16.msra.mxu0 0
        %914 = vmatprep.subr.bf16.mxu0 0
        %915 = vmatpush1.bf16.msra.mxu0 0
        %916 = vmatprep.subr.bf16.mxu0 0
        %917 = vmatpush1.bf16.msra.mxu0 0
        %918 = vmatprep.subr.bf16.mxu0 0
        %919 = vmatpush1.bf16.msra.mxu0 0
        %920 = vmatprep.subr.bf16.mxu0 0
        %921 = vmatpush1.bf16.msra.mxu0 0
        %922 = vmatprep.subr.bf16.mxu0 0
        %923 = vmatpush1.bf16.msra.mxu0 0
        %924 = vmatprep.subr.bf16.mxu0 0
        %925 = vmatpush1.bf16.msra.mxu0 0
        %926 = vmatprep.subr.bf16.mxu0 0
        %927 = vmatpush1.bf16.msra.mxu0 0
        %928 = vmatprep.subr.bf16.mxu0 0
        %929 = vmatpush1.bf16.msra.mxu0 0
        %930 = vmatprep.subr.bf16.mxu0 0
        %931 = vmatpush1.bf16.msra.mxu0 0
        %932 = vmatprep.subr.bf16.mxu0 0
        %933 = vmatpush1.bf16.msra.mxu0 0
        %934 = vmatprep.subr.bf16.mxu0 0
        %935 = vmatpush1.bf16.msra.mxu0 0
        %936 = vmatprep.subr.bf16.mxu0 0
        %937 = vmatpush1.bf16.msra.mxu0 0
        %938 = vmatprep.subr.bf16.mxu0 0
        %939 = vmatpush1.bf16.msra.mxu0 0
        %940 = vmatprep.mubr.bf16.mxu0 0
        %941 = vmatmul.mubr.bf16.gmra.mrb[0].mxu0 %v502
        %v942 = vpop.f32.mrb[0].mxu0
        %v943 = vadd.f32 %v894, %v942
        %v944 = vpop.f32.mrb[0].mxu0
        %v945 = vpop.f32.mrb[0].mxu0
        %v946 = vpop.f32.mrb[0].mxu0
        %947 = vdwg.mxu0
        %s948 = scalar_lea.vmem [#allocation8], 32
        %v949 = vld [vmem:[%s948] sm:$0xf]
        %v950 = vld [vmem:[%s948 + $0x4] sm:$0xf]
        %v951 = vld [vmem:[%s948 + $0x8] sm:$0xf]
        %v952 = vld [vmem:[%s948 + $0xc] sm:$0xf]
        %s953 = scalar_lea.vmem [#allocation10], 2
        %v954 = vld [vmem:[%s953] sm:$0x1]
        %v956 = vlaneseq
        %v957 = vshrl.u32 %v956, 7
        %v958 = vsub.s32 0, %v957
        %v959 = vrot.slane %v954, %v958
        %v965 = vunpack.c.l.b16 %v949
        %v966 = vunpack.c.l.b16 %v950
        %v967 = vunpack.c.l.b16 %v951
        %v968 = vunpack.c.l.b16 %v952
        %v969 = vpack.c.b16 %v966, %v965
        %v970 = vpack.c.b16 %v968, %v967
        %973 = vmatprep.subr.bf16.mxu0 0
        %974 = vmatpush1.bf16.msra.mxu0 %v969
        %975 = vmatprep.subr.bf16.mxu0 0
        %976 = vmatpush1.bf16.msra.mxu0 %v970
        %977 = vmatprep.subr.bf16.mxu0 0
        %978 = vmatpush1.bf16.msra.mxu0 0
        %979 = vmatprep.subr.bf16.mxu0 0
        %980 = vmatpush1.bf16.msra.mxu0 0
        %981 = vmatprep.subr.bf16.mxu0 0
        %982 = vmatpush1.bf16.msra.mxu0 0
        %983 = vmatprep.subr.bf16.mxu0 0
        %984 = vmatpush1.bf16.msra.mxu0 0
        %985 = vmatprep.subr.bf16.mxu0 0
        %986 = vmatpush1.bf16.msra.mxu0 0
        %987 = vmatprep.subr.bf16.mxu0 0
        %988 = vmatpush1.bf16.msra.mxu0 0
        %989 = vmatprep.subr.bf16.mxu0 0
        %990 = vmatpush1.bf16.msra.mxu0 0
        %991 = vmatprep.subr.bf16.mxu0 0
        %992 = vmatpush1.bf16.msra.mxu0 0
        %993 = vmatprep.subr.bf16.mxu0 0
        %994 = vmatpush1.bf16.msra.mxu0 0
        %995 = vmatprep.subr.bf16.mxu0 0
        %996 = vmatpush1.bf16.msra.mxu0 0
        %997 = vmatprep.subr.bf16.mxu0 0
        %998 = vmatpush1.bf16.msra.mxu0 0
        %999 = vmatprep.subr.bf16.mxu0 0
        %1000 = vmatpush1.bf16.msra.mxu0 0
        %1001 = vmatprep.subr.bf16.mxu0 0
        %1002 = vmatpush1.bf16.msra.mxu0 0
        %1003 = vmatprep.subr.bf16.mxu0 0
        %1004 = vmatpush1.bf16.msra.mxu0 0
        %1005 = vmatprep.mubr.bf16.mxu0 0
        %1006 = vmatmul.mubr.bf16.gmra.mrb[0].mxu0 %v502
        %v1007 = vpop.f32.mrb[0].mxu0
        %v1008 = vadd.f32 %v959, %v1007
        %v1009 = vpop.f32.mrb[0].mxu0
        %v1010 = vpop.f32.mrb[0].mxu0
        %v1011 = vpop.f32.mrb[0].mxu0
        %1012 = vdwg.mxu0
        %s1013 = scalar_lea.vmem [#allocation11], 32
        %v1014 = vld [vmem:[%s1013] sm:$0xf]
        %v1015 = vld [vmem:[%s1013 + $0x4] sm:$0xf]
        %v1016 = vld [vmem:[%s1013 + $0x8] sm:$0xf]
        %v1017 = vld [vmem:[%s1013 + $0xc] sm:$0xf]
        %s1018 = scalar_lea.vmem [#allocation13], 2
        %v1019 = vld [vmem:[%s1018] sm:$0x1]
        %v1021 = vlaneseq
        %v1022 = vshrl.u32 %v1021, 7
        %v1023 = vsub.s32 0, %v1022
        %v1024 = vrot.slane %v1019, %v1023
        %v1030 = vunpack.c.l.b16 %v1014
        %v1031 = vunpack.c.l.b16 %v1015
        %v1032 = vunpack.c.l.b16 %v1016
        %v1033 = vunpack.c.l.b16 %v1017
        %v1034 = vpack.c.b16 %v1031, %v1030
        %v1035 = vpack.c.b16 %v1033, %v1032
        %1038 = vmatprep.subr.bf16.mxu0 0
        %1039 = vmatpush1.bf16.msra.mxu0 %v1034
        %1040 = vmatprep.subr.bf16.mxu0 0
        %1041 = vmatpush1.bf16.msra.mxu0 %v1035
        %1042 = vmatprep.subr.bf16.mxu0 0
        %1043 = vmatpush1.bf16.msra.mxu0 0
        %1044 = vmatprep.subr.bf16.mxu0 0
        %1045 = vmatpush1.bf16.msra.mxu0 0
        %1046 = vmatprep.subr.bf16.mxu0 0
        %1047 = vmatpush1.bf16.msra.mxu0 0
        %1048 = vmatprep.subr.bf16.mxu0 0
        %1049 = vmatpush1.bf16.msra.mxu0 0
        %1050 = vmatprep.subr.bf16.mxu0 0
        %1051 = vmatpush1.bf16.msra.mxu0 0
        %1052 = vmatprep.subr.bf16.mxu0 0
        %1053 = vmatpush1.bf16.msra.mxu0 0
        %1054 = vmatprep.subr.bf16.mxu0 0
        %1055 = vmatpush1.bf16.msra.mxu0 0
        %1056 = vmatprep.subr.bf16.mxu0 0
        %1057 = vmatpush1.bf16.msra.mxu0 0
        %1058 = vmatprep.subr.bf16.mxu0 0
        %1059 = vmatpush1.bf16.msra.mxu0 0
        %1060 = vmatprep.subr.bf16.mxu0 0
        %1061 = vmatpush1.bf16.msra.mxu0 0
        %1062 = vmatprep.subr.bf16.mxu0 0
        %1063 = vmatpush1.bf16.msra.mxu0 0
        %1064 = vmatprep.subr.bf16.mxu0 0
        %1065 = vmatpush1.bf16.msra.mxu0 0
        %1066 = vmatprep.subr.bf16.mxu0 0
        %1067 = vmatpush1.bf16.msra.mxu0 0
        %1068 = vmatprep.subr.bf16.mxu0 0
        %1069 = vmatpush1.bf16.msra.mxu0 0
        %1070 = vmatprep.mubr.bf16.mxu0 0
        %1071 = vmatmul.mubr.bf16.gmra.mrb[0].mxu0 %v502
        %v1072 = vpop.f32.mrb[0].mxu0
        %v1073 = vadd.f32 %v1024, %v1072
        %v1074 = vpop.f32.mrb[0].mxu0
        %v1075 = vpop.f32.mrb[0].mxu0
        %v1076 = vpop.f32.mrb[0].mxu0
        %1077 = vdwg.mxu0
        %v1078 = vmul.f32 %v943, 0.35355338
        %v1079 = vpack.c.bf16 %v1078, %v1078
        %s1080 = scalar_lea.vmem %s459, 8 [#allocation14]
        %1081 = vst.msk [vmem:[%s1080] sm:$0xf] %vm672, %v1079
        %v1082 = vpack.c.bf16 %v1008, %v1008
        %s1083 = scalar_lea.vmem %s466, 8 [#allocation15]
        %1084 = vst.msk [vmem:[%s1083] sm:$0xf] %vm672, %v1082
        %v1085 = vpack.c.bf16 %v1073, %v1073
        %s1086 = scalar_lea.vmem %s473, 8 [#allocation17]
        %1087 = vst.msk [vmem:[%s1086] sm:$0xf] %vm672, %v1085
        %s1088 = scalar_lea.vmem [#allocation5], 48
        %v1089 = vld [vmem:[%s1088] sm:$0xf]
        %v1090 = vld [vmem:[%s1088 + $0x4] sm:$0xf]
        %v1091 = vld [vmem:[%s1088 + $0x8] sm:$0xf]
        %v1092 = vld [vmem:[%s1088 + $0xc] sm:$0xf]
        %s1093 = scalar_lea.vmem [#allocation7], 3
        %v1094 = vld [vmem:[%s1093] sm:$0x1]
        %v1096 = vlaneseq
        %v1097 = vshrl.u32 %v1096, 7
        %v1098 = vsub.s32 0, %v1097
        %v1099 = vrot.slane %v1094, %v1098
        %v1105 = vunpack.c.l.b16 %v1089
        %v1106 = vunpack.c.l.b16 %v1090
        %v1107 = vunpack.c.l.b16 %v1091
        %v1108 = vunpack.c.l.b16 %v1092
        %v1109 = vpack.c.b16 %v1106, %v1105
        %v1110 = vpack.c.b16 %v1108, %v1107
        %1113 = vmatprep.subr.bf16.mxu0 0
        %1114 = vmatpush1.bf16.msra.mxu0 %v1109
        %1115 = vmatprep.subr.bf16.mxu0 0
        %1116 = vmatpush1.bf16.msra.mxu0 %v1110
        %1117 = vmatprep.subr.bf16.mxu0 0
        %1118 = vmatpush1.bf16.msra.mxu0 0
        %1119 = vmatprep.subr.bf16.mxu0 0
        %1120 = vmatpush1.bf16.msra.mxu0 0
        %1121 = vmatprep.subr.bf16.mxu0 0
        %1122 = vmatpush1.bf16.msra.mxu0 0
        %1123 = vmatprep.subr.bf16.mxu0 0
        %1124 = vmatpush1.bf16.msra.mxu0 0
        %1125 = vmatprep.subr.bf16.mxu0 0
        %1126 = vmatpush1.bf16.msra.mxu0 0
        %1127 = vmatprep.subr.bf16.mxu0 0
        %1128 = vmatpush1.bf16.msra.mxu0 0
        %1129 = vmatprep.subr.bf16.mxu0 0
        %1130 = vmatpush1.bf16.msra.mxu0 0
        %1131 = vmatprep.subr.bf16.mxu0 0
        %1132 = vmatpush1.bf16.msra.mxu0 0
        %1133 = vmatprep.subr.bf16.mxu0 0
        %1134 = vmatpush1.bf16.msra.mxu0 0
        %1135 = vmatprep.subr.bf16.mxu0 0
        %1136 = vmatpush1.bf16.msra.mxu0 0
        %1137 = vmatprep.subr.bf16.mxu0 0
        %1138 = vmatpush1.bf16.msra.mxu0 0
        %1139 = vmatprep.subr.bf16.mxu0 0
        %1140 = vmatpush1.bf16.msra.mxu0 0
        %1141 = vmatprep.subr.bf16.mxu0 0
        %1142 = vmatpush1.bf16.msra.mxu0 0
        %1143 = vmatprep.subr.bf16.mxu0 0
        %1144 = vmatpush1.bf16.msra.mxu0 0
        %1145 = vmatprep.mubr.bf16.mxu0 0
        %1146 = vmatmul.mubr.bf16.gmra.mrb[0].mxu0 %v502
        %v1147 = vpop.f32.mrb[0].mxu0
        %v1148 = vadd.f32 %v1099, %v1147
        %v1149 = vpop.f32.mrb[0].mxu0
        %v1150 = vpop.f32.mrb[0].mxu0
        %v1151 = vpop.f32.mrb[0].mxu0
        %1152 = vdwg.mxu0
        %s1153 = scalar_lea.vmem [#allocation8], 48
        %v1154 = vld [vmem:[%s1153] sm:$0xf]
        %v1155 = vld [vmem:[%s1153 + $0x4] sm:$0xf]
        %v1156 = vld [vmem:[%s1153 + $0x8] sm:$0xf]
        %v1157 = vld [vmem:[%s1153 + $0xc] sm:$0xf]
        %s1158 = scalar_lea.vmem [#allocation10], 3
        %v1159 = vld [vmem:[%s1158] sm:$0x1]
        %v1161 = vlaneseq
        %v1162 = vshrl.u32 %v1161, 7
        %v1163 = vsub.s32 0, %v1162
        %v1164 = vrot.slane %v1159, %v1163
        %v1170 = vunpack.c.l.b16 %v1154
        %v1171 = vunpack.c.l.b16 %v1155
        %v1172 = vunpack.c.l.b16 %v1156
        %v1173 = vunpack.c.l.b16 %v1157
        %v1174 = vpack.c.b16 %v1171, %v1170
        %v1175 = vpack.c.b16 %v1173, %v1172
        %1178 = vmatprep.subr.bf16.mxu0 0
        %1179 = vmatpush1.bf16.msra.mxu0 %v1174
        %1180 = vmatprep.subr.bf16.mxu0 0
        %1181 = vmatpush1.bf16.msra.mxu0 %v1175
        %1182 = vmatprep.subr.bf16.mxu0 0
        %1183 = vmatpush1.bf16.msra.mxu0 0
        %1184 = vmatprep.subr.bf16.mxu0 0
        %1185 = vmatpush1.bf16.msra.mxu0 0
        %1186 = vmatprep.subr.bf16.mxu0 0
        %1187 = vmatpush1.bf16.msra.mxu0 0
        %1188 = vmatprep.subr.bf16.mxu0 0
        %1189 = vmatpush1.bf16.msra.mxu0 0
        %1190 = vmatprep.subr.bf16.mxu0 0
        %1191 = vmatpush1.bf16.msra.mxu0 0
        %1192 = vmatprep.subr.bf16.mxu0 0
        %1193 = vmatpush1.bf16.msra.mxu0 0
        %1194 = vmatprep.subr.bf16.mxu0 0
        %1195 = vmatpush1.bf16.msra.mxu0 0
        %1196 = vmatprep.subr.bf16.mxu0 0
        %1197 = vmatpush1.bf16.msra.mxu0 0
        %1198 = vmatprep.subr.bf16.mxu0 0
        %1199 = vmatpush1.bf16.msra.mxu0 0
        %1200 = vmatprep.subr.bf16.mxu0 0
        %1201 = vmatpush1.bf16.msra.mxu0 0
        %1202 = vmatprep.subr.bf16.mxu0 0
        %1203 = vmatpush1.bf16.msra.mxu0 0
        %1204 = vmatprep.subr.bf16.mxu0 0
        %1205 = vmatpush1.bf16.msra.mxu0 0
        %1206 = vmatprep.subr.bf16.mxu0 0
        %1207 = vmatpush1.bf16.msra.mxu0 0
        %1208 = vmatprep.subr.bf16.mxu0 0
        %1209 = vmatpush1.bf16.msra.mxu0 0
        %1210 = vmatprep.mubr.bf16.mxu0 0
        %1211 = vmatmul.mubr.bf16.gmra.mrb[0].mxu0 %v502
        %v1212 = vpop.f32.mrb[0].mxu0
        %v1213 = vadd.f32 %v1164, %v1212
        %v1214 = vpop.f32.mrb[0].mxu0
        %v1215 = vpop.f32.mrb[0].mxu0
        %v1216 = vpop.f32.mrb[0].mxu0
        %1217 = vdwg.mxu0
        %s1218 = scalar_lea.vmem [#allocation11], 48
        %v1219 = vld [vmem:[%s1218] sm:$0xf]
        %v1220 = vld [vmem:[%s1218 + $0x4] sm:$0xf]
        %v1221 = vld [vmem:[%s1218 + $0x8] sm:$0xf]
        %v1222 = vld [vmem:[%s1218 + $0xc] sm:$0xf]
        %s1223 = scalar_lea.vmem [#allocation13], 3
        %v1224 = vld [vmem:[%s1223] sm:$0x1]
        %v1226 = vlaneseq
        %v1227 = vshrl.u32 %v1226, 7
        %v1228 = vsub.s32 0, %v1227
        %v1229 = vrot.slane %v1224, %v1228
        %v1235 = vunpack.c.l.b16 %v1219
        %v1236 = vunpack.c.l.b16 %v1220
        %v1237 = vunpack.c.l.b16 %v1221
        %v1238 = vunpack.c.l.b16 %v1222
        %v1239 = vpack.c.b16 %v1236, %v1235
        %v1240 = vpack.c.b16 %v1238, %v1237
        %1243 = vmatprep.subr.bf16.mxu0 0
        %1244 = vmatpush1.bf16.msra.mxu0 %v1239
        %1245 = vmatprep.subr.bf16.mxu0 0
        %1246 = vmatpush1.bf16.msra.mxu0 %v1240
        %1247 = vmatprep.subr.bf16.mxu0 0
        %1248 = vmatpush1.bf16.msra.mxu0 0
        %1249 = vmatprep.subr.bf16.mxu0 0
        %1250 = vmatpush1.bf16.msra.mxu0 0
        %1251 = vmatprep.subr.bf16.mxu0 0
        %1252 = vmatpush1.bf16.msra.mxu0 0
        %1253 = vmatprep.subr.bf16.mxu0 0
        %1254 = vmatpush1.bf16.msra.mxu0 0
        %1255 = vmatprep.subr.bf16.mxu0 0
        %1256 = vmatpush1.bf16.msra.mxu0 0
        %1257 = vmatprep.subr.bf16.mxu0 0
        %1258 = vmatpush1.bf16.msra.mxu0 0
        %1259 = vmatprep.subr.bf16.mxu0 0
        %1260 = vmatpush1.bf16.msra.mxu0 0
        %1261 = vmatprep.subr.bf16.mxu0 0
        %1262 = vmatpush1.bf16.msra.mxu0 0
        %1263 = vmatprep.subr.bf16.mxu0 0
        %1264 = vmatpush1.bf16.msra.mxu0 0
        %1265 = vmatprep.subr.bf16.mxu0 0
        %1266 = vmatpush1.bf16.msra.mxu0 0
        %1267 = vmatprep.subr.bf16.mxu0 0
        %1268 = vmatpush1.bf16.msra.mxu0 0
        %1269 = vmatprep.subr.bf16.mxu0 0
        %1270 = vmatpush1.bf16.msra.mxu0 0
        %1271 = vmatprep.subr.bf16.mxu0 0
        %1272 = vmatpush1.bf16.msra.mxu0 0
        %1273 = vmatprep.subr.bf16.mxu0 0
        %1274 = vmatpush1.bf16.msra.mxu0 0
        %1275 = vmatprep.mubr.bf16.mxu0 0
        %1276 = vmatmul.mubr.bf16.gmra.mrb[0].mxu0 %v502
        %v1277 = vpop.f32.mrb[0].mxu0
        %v1278 = vadd.f32 %v1229, %v1277
        %v1279 = vpop.f32.mrb[0].mxu0
        %v1280 = vpop.f32.mrb[0].mxu0
        %v1281 = vpop.f32.mrb[0].mxu0
        %1282 = vdwg.mxu0
        %v1283 = vmul.f32 %v1148, 0.35355338
        %v1284 = vpack.c.bf16 %v1283, %v1283
        %s1285 = scalar_lea.vmem %s459, 12 [#allocation14]
        %1286 = vst.msk [vmem:[%s1285] sm:$0xf] %vm672, %v1284
        %v1287 = vpack.c.bf16 %v1213, %v1213
        %s1288 = scalar_lea.vmem %s466, 12 [#allocation15]
        %1289 = vst.msk [vmem:[%s1288] sm:$0xf] %vm672, %v1287
        %v1290 = vpack.c.bf16 %v1278, %v1278
        %s1291 = scalar_lea.vmem %s473, 12 [#allocation17]
        %1292 = vst.msk [vmem:[%s1291] sm:$0xf] %vm672, %v1290
        %s1293 = sand.u32 %s209, 1
        %s1294 = scalar_lea.sflag [#allocation4], %s1293
        %s1295 = sand.u32 %s209, 1
        %s1296 = smul.addr %s1295, 16
        %s1297 = scalar_lea.vmem [#allocation14], %s1296
        %s1298 = sand.u32 %s33, 1
        %s1299 = scalar_lea.sflag [#allocation16], %s1298
        %s1300 = sand.u32 %s237, 1
        %s1301 = smul.addr %s1300, 16
        %s1302 = scalar_lea.vmem [#allocation15], %s1301
        %s1303 = sand.u32 %s33, 1
        %s1304 = scalar_lea.sflag [#allocation16], %s1303
        %s1305 = sand.u32 %s265, 1
        %s1306 = smul.addr %s1305, 16
        %s1307 = scalar_lea.vmem [#allocation17], %s1306
        // Predicated region
        $region77: #{tpu_custom_call.1} parent=47 // pred_check
          %p1308 = pneg %p219
        $region78: #{tpu_custom_call.1} parent=47 // pred_check_branch
          %1310 = sbr.rel (%p1308) target = $region80
        $region79: #{tpu_custom_call.1} parent=47 // pred_region
          %s1312 = ssub.s32 256, 256
          %1313 = vsyncadd %s1294, %s1312
          %s1314 = smul.addr %s37, 4
          %s1315 = sadd.s32 %s38, %s1314
          %s1316 = smul.addr %s1315, 64
          %s1317 = scalar_lea.hbm %s7, %s1316
          %s1318 = sshll.u32 %s1297, 4
          %s1319 = int_to_ptr.vmem [resolvable:$true] %s1318
          %1324 = dma.vmem_to_hbm [thread:$0]  %s1319, 256, %s1317, %s1294, 64, 64, 4
        $region80: #{tpu_custom_call.1} parent=47 // pred_fallthru
          _
        // Predicated region
        $region81: #{tpu_custom_call.1} parent=47 // pred_check
          %p1325 = pneg %p247
        $region82: #{tpu_custom_call.1} parent=47 // pred_check_branch
          %1327 = sbr.rel (%p1325) target = $region84
        $region83: #{tpu_custom_call.1} parent=47 // pred_region
          %s1329 = ssub.s32 256, 256
          %1330 = vsyncadd %s1299, %s1329
          %s1331 = smul.addr %s37, 4
          %s1332 = sadd.s32 %s38, %s1331
          %s1333 = smul.addr %s1332, 64
          %s1334 = scalar_lea.hbm %s8, %s1333
          %s1335 = sshll.u32 %s1302, 4
          %s1336 = int_to_ptr.vmem [resolvable:$true] %s1335
          %1341 = dma.vmem_to_hbm [thread:$0]  %s1336, 256, %s1334, %s1299, 64, 64, 4
        $region84: #{tpu_custom_call.1} parent=47 // pred_fallthru
          _
        // Predicated region
        $region85: #{tpu_custom_call.1} parent=47 // pred_check
          %p1342 = pneg %p275
        $region86: #{tpu_custom_call.1} parent=47 // pred_check_branch
          %1344 = sbr.rel (%p1342) target = $region88
        $region87: #{tpu_custom_call.1} parent=47 // pred_region
          %s1346 = ssub.s32 256, 256
          %1347 = vsyncadd %s1304, %s1346
          %s1348 = smul.addr %s37, 4
          %s1349 = sadd.s32 %s38, %s1348
          %s1350 = smul.addr %s1349, 64
          %s1351 = scalar_lea.hbm %s9, %s1350
          %s1352 = sshll.u32 %s1307, 4
          %s1353 = int_to_ptr.vmem [resolvable:$true] %s1352
          %1358 = dma.vmem_to_hbm [thread:$0]  %s1353, 256, %s1351, %s1304, 64, 64, 4
        $region88: #{tpu_custom_call.1} parent=47 // pred_fallthru
          _
      $region48: #{tpu_custom_call.1} parent=5 // pred_fallthru
        _
      %p1359 = scmp.le.s32.totalorder 2, %s28
      // Predicated region
      $region89: #{tpu_custom_call.1} parent=5 // pred_check
        %p1360 = pneg %p1359
      $region90: #{tpu_custom_call.1} parent=5 // pred_check_branch
        %1362 = sbr.rel (%p1360) target = $region92
      $region91: #{tpu_custom_call.1} parent=5 // pred_region
        %s1363 = ssub.s32 %s28, 2
        // Predicated region
        $region93: #{tpu_custom_call.1} parent=91 // pred_check
          %p1364 = pneg %p225
        $region94: #{tpu_custom_call.1} parent=91 // pred_check_branch
          %1366 = sbr.rel (%p1364) target = $region96
        $region95: #{tpu_custom_call.1} parent=91 // pred_region
          %s1367 = sand.u32 %s210, 1
          %s1368 = scalar_lea.sflag [#allocation4], %s1367
          %s1369 = sand.u32 %s210, 1
          %s1370 = smul.addr %s1369, 16
          %s1371 = scalar_lea.vmem [#allocation14], %s1370
          %1372 = dma.done %s1368, 256
        $region96: #{tpu_custom_call.1} parent=91 // pred_fallthru
          _
        // Predicated region
        $region97: #{tpu_custom_call.1} parent=91 // pred_check
          %p1373 = pneg %p253
        $region98: #{tpu_custom_call.1} parent=91 // pred_check_branch
          %1375 = sbr.rel (%p1373) target = $region100
        $region99: #{tpu_custom_call.1} parent=91 // pred_region
          %s1376 = sand.u32 %s34, 1
          %s1377 = scalar_lea.sflag [#allocation16], %s1376
          %s1378 = sand.u32 %s238, 1
          %s1379 = smul.addr %s1378, 16
          %s1380 = scalar_lea.vmem [#allocation15], %s1379
          %1381 = dma.done %s1377, 256
        $region100: #{tpu_custom_call.1} parent=91 // pred_fallthru
          _
        // Predicated region
        $region101: #{tpu_custom_call.1} parent=91 // pred_check
          %p1382 = pneg %p281
        $region102: #{tpu_custom_call.1} parent=91 // pred_check_branch
          %1384 = sbr.rel (%p1382) target = $region104
        $region103: #{tpu_custom_call.1} parent=91 // pred_region
          %s1385 = sand.u32 %s34, 1
          %s1386 = scalar_lea.sflag [#allocation16], %s1385
          %s1387 = sand.u32 %s266, 1
          %s1388 = smul.addr %s1387, 16
          %s1389 = scalar_lea.vmem [#allocation17], %s1388
          %1390 = dma.done %s1386, 256
        $region104: #{tpu_custom_call.1} parent=91 // pred_fallthru
          _
      $region92: #{tpu_custom_call.1} parent=5 // pred_fallthru
        _
    $region6: #{tpu_custom_call.1} parent=1 // loop_footer
      %s32 = sadd.s32 1, %s28
    $region7: #{tpu_custom_call.1} parent=1 // loop_footer_branch
      %27 = sbr.rel target = $region3
    $region8: #{tpu_custom_call.1} parent=1 // loop_exit
      _
    %1391 = vsyncpa [#allocation3], 1
    %s1392 = scalar_lea.sflag [#allocation3], 1
    %1393 = vsyncpa %s1392, 1
    %1394 = vsyncpa [#allocation6], 1
    %1395 = vsyncpa [#allocation9], 1
    %1396 = vsyncpa [#allocation12], 1
    %1397 = vsyncpa [#allocation4], 1
    %s1398 = scalar_lea.sflag [#allocation4], 1
    %1399 = vsyncpa %s1398, 1
    %1400 = vsyncpa [#allocation16], 1
    %s1401 = scalar_lea.sflag [#allocation16], 1
    %1402 = vsyncpa %s1401, 1

</llo_original>
